<compile_context>
chip_gen: v6e
topology: v6e:2x2x1
jax: 0.10.0
libtpu: 0.0.40
codegen_flags: <defaults>
</compile_context>

<pallas_src>
import functools

import jax
import jax.numpy as jnp
from jax import lax
from jax.experimental import pallas as pl
from jax.experimental.pallas import tpu as pltpu


def lstm_mlp_kernel(x_ref, wih_ref, whh_ref, b_ref,
                    w1_ref, b1_ref, w2_ref, b2_ref,
                    out_ref, hs_sc,
                    *, seq_len, batch, matmul_dtype):
    """Whole forward in a single grid-less invocation.

    x_ref   : (seq_len*batch, input_size)  time-major rows, flattened in the wrapper
    wih_ref : (input_size, 4H)  W_ih^T, PyTorch gate order i,f,g,o
    whh_ref : (H, 4H)           W_hh^T
    b_ref   : (1, 4H)           b_ih + b_hh (folded once into the hoisted x-projection)
    w1_ref  : (H, dense)        dense1.weight^T     b1_ref: (1, dense)
    w2_ref  : (dense, out)      output.weight^T     b2_ref: (1, out)
    out_ref : (seq_len*batch, out)
    hs_sc   : VMEM (seq_len*batch, H) scratch holding every step's hidden state
    """
    H = whh_ref.shape[0]
    md = matmul_dtype

    # ---- (1) Hoisted input projection: ONE batched matmul over all timesteps,
    #          bias folded in here so it is not re-added inside the recurrence.
    xproj = (jnp.dot(x_ref[...].astype(md), wih_ref[...].astype(md),
                     preferred_element_type=jnp.float32)
             + b_ref[...])                                   # (T*B, 4H), f32

    # ---- (2) Serial recurrence: only h @ W_hh + gate elementwise math per step.
    # Fully unrolled (static seq_len) -- equivalent to lax.fori_loop(..., unroll=True),
    # but with static indices so every VMEM access is a static sub-tile access.
    whh = whh_ref[...].astype(md)                            # loaded / cast once
    h = jnp.zeros((batch, H), jnp.float32)
    c = jnp.zeros((batch, H), jnp.float32)
    for t in range(seq_len):
        gates = (xproj[t * batch:(t + 1) * batch, :]
                 + jnp.dot(h.astype(md), whh, preferred_element_type=jnp.float32))
        # PyTorch gate order: i, f, g, o.
        # NOTE: at H=32 these are intra-vreg lane slices (cheap at this size); for
        # production H, pad to a multiple of 128 or use a sublane (4, H) gate layout.
        i_g = jax.nn.sigmoid(gates[:, 0 * H:1 * H])
        f_g = jax.nn.sigmoid(gates[:, 1 * H:2 * H])
        g_g = jnp.tanh(gates[:, 2 * H:3 * H])
        o_g = jax.nn.sigmoid(gates[:, 3 * H:4 * H])
        c = f_g * c + i_g * g_g
        h = o_g * jnp.tanh(c)
        hs_sc[t * batch:(t + 1) * batch, :] = h

    # ---- (3) Hoisted MLP tail: relu -> dense1 -> relu -> output, batched over time,
    #          single writeback to the output buffer.
    hr = jnp.maximum(hs_sc[...], 0.0)
    d1 = (jnp.dot(hr.astype(md), w1_ref[...].astype(md),
                  preferred_element_type=jnp.float32) + b1_ref[...])
    d1 = jnp.maximum(d1, 0.0)
    out = (jnp.dot(d1.astype(md), w2_ref[...].astype(md),
                   preferred_element_type=jnp.float32) + b2_ref[...])
    out_ref[...] = out.astype(out_ref.dtype)


def lstm_network_forward(x, params, matmul_dtype=jnp.float32):
    """x: (seq_len, batch, input_size) f32 -> (seq_len, batch, output_size) f32.

    matmul_dtype=jnp.bfloat16 is the recommended MXU operand dtype on v6e/v7x (only the
    jnp.dot operands are cast); state/elementwise math stays f32 (v5e-safe) and all
    matmuls accumulate in f32 via preferred_element_type.
    """
    seq_len, batch, input_size = x.shape
    wih, whh, b, w1, b1, w2, b2 = params
    hidden_size = whh.shape[0]
    output_size = w2.shape[1]
    rows = seq_len * batch

    x2d = x.reshape(rows, input_size)    # free layout plumbing in the wrapper

    kernel = functools.partial(
        lstm_mlp_kernel, seq_len=seq_len, batch=batch, matmul_dtype=matmul_dtype)

    vmem_spec = pl.BlockSpec(memory_space=pltpu.MemorySpace.VMEM)
    out2d = pl.pallas_call(
        kernel,
        out_shape=jax.ShapeDtypeStruct((rows, output_size), jnp.float32),
        in_specs=[vmem_spec] * 8,        # whole arrays resident in VMEM, DMA'd once
        out_specs=vmem_spec,
        scratch_shapes=[pltpu.VMEM((rows, hidden_size), jnp.float32)],  # all h_t
        compiler_params=pltpu.CompilerParams(
            # footprint here is a few KiB; explicit cap keeps headroom on v7x's 64 MiB
            vmem_limit_bytes=32 * 1024 * 1024),
    )(x2d, wih, whh, b, w1, b1, w2, b2)

    # TODO(synk): for large batch on v7x, add a leading "parallel" grid axis over batch
    # tiles to use both TensorCores; at batch=2 a single invocation is optimal.
    return out2d.reshape(seq_len, batch, output_size)


def make_params(key, input_size, hidden_size, dense_size, output_size):
    ks = jax.random.split(key, 8)
    s = 0.1
    # PyTorch stores weight_ih_l0 as (4H, input) -- pre-transposed here to (input, 4H).
    wih = s * jax.random.normal(ks[0], (input_size, 4 * hidden_size), jnp.float32)
    whh = s * jax.random.normal(ks[1], (hidden_size, 4 * hidden_size), jnp.float32)
    b_ih = s * jax.random.normal(ks[2], (4 * hidden_size,), jnp.float32)
    b_hh = s * jax.random.normal(ks[3], (4 * hidden_size,), jnp.float32)
    b = (b_ih + b_hh).reshape(1, 4 * hidden_size)
    w1 = s * jax.random.normal(ks[4], (hidden_size, dense_size), jnp.float32)
    b1 = s * jax.random.normal(ks[5], (1, dense_size), jnp.float32)
    w2 = s * jax.random.normal(ks[6], (dense_size, output_size), jnp.float32)
    b2 = s * jax.random.normal(ks[7], (1, output_size), jnp.float32)
    return (wih, whh, b, w1, b1, w2, b2)


def reference_forward(x, params):
    """Pure-JAX reference with PyTorch LSTM semantics."""
    wih, whh, b, w1, b1, w2, b2 = params
    H = whh.shape[0]
    seq_len, batch, _ = x.shape
    h = jnp.zeros((batch, H), jnp.float32)
    c = jnp.zeros((batch, H), jnp.float32)

    def step(carry, x_t):
        h, c = carry
        g = x_t @ wih + h @ whh + b
        i = jax.nn.sigmoid(g[:, 0 * H:1 * H])
        f = jax.nn.sigmoid(g[:, 1 * H:2 * H])
        gg = jnp.tanh(g[:, 2 * H:3 * H])
        o = jax.nn.sigmoid(g[:, 3 * H:4 * H])
        c = f * c + i * gg
        h = o * jnp.tanh(c)
        return (h, c), h

    _, hs = lax.scan(step, (h, c), x)
    hr = jnp.maximum(hs, 0.0)
    d1 = jnp.maximum(hr @ w1 + b1, 0.0)
    return d1 @ w2 + b2


if __name__ == "__main__":
    seq_len, batch = 8, 2
    input_size, hidden_size, dense_size, output_size = 10, 32, 16, 2

    key = jax.random.PRNGKey(0)
    kx, kp = jax.random.split(key)
    x = jax.random.normal(kx, (seq_len, batch, input_size), jnp.float32)
    params = make_params(kp, input_size, hidden_size, dense_size, output_size)

    ref = reference_forward(x, params)

    # f32 MXU path (exact match to reference).
    out = jax.block_until_ready(lstm_network_forward(x, params))
    assert out.shape == (seq_len, batch, output_size)
    assert jnp.allclose(out, ref, atol=1e-5, rtol=1e-5), "mismatch vs reference (f32)"

    # bf16 MXU-operand path (v6e/v7x recommendation); f32 accumulate + f32 elementwise.
    out_bf16 = jax.block_until_ready(
        lstm_network_forward(x, params, matmul_dtype=jnp.bfloat16))
    assert jnp.max(jnp.abs(out_bf16 - ref)) < 0.1, "bf16 path diverged"

    print("KERNEL_OK")
</pallas_src>

<mosaic_0001>
module attributes {stable_mosaic.version = 11 : i64} {
  func.func @lstm_mlp_kernel(%arg0: memref<16x10xf32, #tpu.memory_space<vmem>>, %arg1: memref<10x128xf32, #tpu.memory_space<vmem>>, %arg2: memref<32x128xf32, #tpu.memory_space<vmem>>, %arg3: memref<1x128xf32, #tpu.memory_space<vmem>>, %arg4: memref<32x16xf32, #tpu.memory_space<vmem>>, %arg5: memref<1x16xf32, #tpu.memory_space<vmem>>, %arg6: memref<16x2xf32, #tpu.memory_space<vmem>>, %arg7: memref<1x2xf32, #tpu.memory_space<vmem>>, %arg8: memref<16x2xf32, #tpu.memory_space<vmem>>, %arg9: memref<16x32xf32, #tpu.memory_space<vmem>>) attributes {dimension_semantics = [], scalar_prefetch = 0 : i64, scratch_operands = 1 : i64, tpu.core_type = #tpu.core_type<tc>} {
    %c0 = arith.constant 0 : index
    %c0_0 = arith.constant 0 : index
    %0 = vector.load %arg0[%c0, %c0_0] : memref<16x10xf32, #tpu.memory_space<vmem>>, vector<16x10xf32>
    %c0_1 = arith.constant 0 : index
    %c0_2 = arith.constant 0 : index
    %1 = vector.load %arg1[%c0_1, %c0_2] : memref<10x128xf32, #tpu.memory_space<vmem>>, vector<10x128xf32>
    %cst = arith.constant dense<0.000000e+00> : vector<16x128xf32>
    %2 = tpu.matmul %0, %1, %cst {dimension_numbers = #tpu.dot_dimension_numbers<[1], [0], [0], [1], [0, 0, 1, 1], [], []>} : vector<16x10xf32>, vector<10x128xf32>, vector<16x128xf32> -> vector<16x128xf32>
    %c0_3 = arith.constant 0 : index
    %c0_4 = arith.constant 0 : index
    %3 = vector.load %arg3[%c0_3, %c0_4] : memref<1x128xf32, #tpu.memory_space<vmem>>, vector<1x128xf32>
    %4 = vector.broadcast %3 : vector<1x128xf32> to vector<16x128xf32>
    %5 = arith.addf %2, %4 : vector<16x128xf32>
    %c0_5 = arith.constant 0 : index
    %c0_6 = arith.constant 0 : index
    %6 = vector.load %arg2[%c0_5, %c0_6] : memref<32x128xf32, #tpu.memory_space<vmem>>, vector<32x128xf32>
    %cst_7 = arith.constant 0.000000e+00 : f32
    %7 = vector.broadcast %cst_7 : f32 to vector<2x32xf32>
    %cst_8 = arith.constant 0.000000e+00 : f32
    %8 = vector.broadcast %cst_8 : f32 to vector<2x32xf32>
    %9 = vector.extract_strided_slice %5 {offsets = [0, 0], sizes = [2, 128], strides = [1, 1]} : vector<16x128xf32> to vector<2x128xf32>
    %cst_9 = arith.constant dense<0.000000e+00> : vector<2x128xf32>
    %10 = tpu.matmul %7, %6, %cst_9 {dimension_numbers = #tpu.dot_dimension_numbers<[1], [0], [0], [1], [0, 0, 1, 1], [], []>} : vector<2x32xf32>, vector<32x128xf32>, vector<2x128xf32> -> vector<2x128xf32>
    %11 = arith.addf %9, %10 : vector<2x128xf32>
    %12 = vector.extract_strided_slice %11 {offsets = [0, 0], sizes = [2, 32], strides = [1, 1]} : vector<2x128xf32> to vector<2x32xf32>
    %13 = arith.negf %12 : vector<2x32xf32>
    %14 = math.exp %13 : vector<2x32xf32>
    %cst_10 = arith.constant 1.000000e+00 : f32
    %15 = vector.broadcast %cst_10 : f32 to vector<2x32xf32>
    %16 = arith.addf %15, %14 : vector<2x32xf32>
    %17 = arith.divf %15, %16 : vector<2x32xf32>
    %18 = vector.extract_strided_slice %11 {offsets = [0, 32], sizes = [2, 32], strides = [1, 1]} : vector<2x128xf32> to vector<2x32xf32>
    %19 = arith.negf %18 : vector<2x32xf32>
    %20 = math.exp %19 : vector<2x32xf32>
    %cst_11 = arith.constant 1.000000e+00 : f32
    %21 = vector.broadcast %cst_11 : f32 to vector<2x32xf32>
    %22 = arith.addf %21, %20 : vector<2x32xf32>
    %23 = arith.divf %21, %22 : vector<2x32xf32>
    %24 = vector.extract_strided_slice %11 {offsets = [0, 64], sizes = [2, 32], strides = [1, 1]} : vector<2x128xf32> to vector<2x32xf32>
    %25 = math.tanh %24 : vector<2x32xf32>
    %26 = vector.extract_strided_slice %11 {offsets = [0, 96], sizes = [2, 32], strides = [1, 1]} : vector<2x128xf32> to vector<2x32xf32>
    %27 = arith.negf %26 : vector<2x32xf32>
    %28 = math.exp %27 : vector<2x32xf32>
    %cst_12 = arith.constant 1.000000e+00 : f32
    %29 = vector.broadcast %cst_12 : f32 to vector<2x32xf32>
    %30 = arith.addf %29, %28 : vector<2x32xf32>
    %31 = arith.divf %29, %30 : vector<2x32xf32>
    %32 = arith.mulf %23, %8 : vector<2x32xf32>
    %33 = arith.mulf %17, %25 : vector<2x32xf32>
    %34 = arith.addf %32, %33 : vector<2x32xf32>
    %35 = math.tanh %34 : vector<2x32xf32>
    %36 = arith.mulf %31, %35 : vector<2x32xf32>
    %c0_13 = arith.constant 0 : index
    %c0_14 = arith.constant 0 : index
    %37 = vector.load %arg9[%c0_13, %c0_14] : memref<16x32xf32, #tpu.memory_space<vmem>>, vector<2x32xf32>
    tpu.vector_store %arg9[%c0_13, %c0_14], %36 {strides = array<i32>} : memref<16x32xf32, #tpu.memory_space<vmem>>, vector<2x32xf32>,
    %38 = vector.extract_strided_slice %5 {offsets = [2, 0], sizes = [2, 128], strides = [1, 1]} : vector<16x128xf32> to vector<2x128xf32>
    %cst_15 = arith.constant dense<0.000000e+00> : vector<2x128xf32>
    %39 = tpu.matmul %36, %6, %cst_15 {dimension_numbers = #tpu.dot_dimension_numbers<[1], [0], [0], [1], [0, 0, 1, 1], [], []>} : vector<2x32xf32>, vector<32x128xf32>, vector<2x128xf32> -> vector<2x128xf32>
    %40 = arith.addf %38, %39 : vector<2x128xf32>
    %41 = vector.extract_strided_slice %40 {offsets = [0, 0], sizes = [2, 32], strides = [1, 1]} : vector<2x128xf32> to vector<2x32xf32>
    %42 = arith.negf %41 : vector<2x32xf32>
    %43 = math.exp %42 : vector<2x32xf32>
    %cst_16 = arith.constant 1.000000e+00 : f32
    %44 = vector.broadcast %cst_16 : f32 to vector<2x32xf32>
    %45 = arith.addf %44, %43 : vector<2x32xf32>
    %46 = arith.divf %44, %45 : vector<2x32xf32>
    %47 = vector.extract_strided_slice %40 {offsets = [0, 32], sizes = [2, 32], strides = [1, 1]} : vector<2x128xf32> to vector<2x32xf32>
    %48 = arith.negf %47 : vector<2x32xf32>
    %49 = math.exp %48 : vector<2x32xf32>
    %cst_17 = arith.constant 1.000000e+00 : f32
    %50 = vector.broadcast %cst_17 : f32 to vector<2x32xf32>
    %51 = arith.addf %50, %49 : vector<2x32xf32>
    %52 = arith.divf %50, %51 : vector<2x32xf32>
    %53 = vector.extract_strided_slice %40 {offsets = [0, 64], sizes = [2, 32], strides = [1, 1]} : vector<2x128xf32> to vector<2x32xf32>
    %54 = math.tanh %53 : vector<2x32xf32>
    %55 = vector.extract_strided_slice %40 {offsets = [0, 96], sizes = [2, 32], strides = [1, 1]} : vector<2x128xf32> to vector<2x32xf32>
    %56 = arith.negf %55 : vector<2x32xf32>
    %57 = math.exp %56 : vector<2x32xf32>
    %cst_18 = arith.constant 1.000000e+00 : f32
    %58 = vector.broadcast %cst_18 : f32 to vector<2x32xf32>
    %59 = arith.addf %58, %57 : vector<2x32xf32>
    %60 = arith.divf %58, %59 : vector<2x32xf32>
    %61 = arith.mulf %52, %34 : vector<2x32xf32>
    %62 = arith.mulf %46, %54 : vector<2x32xf32>
    %63 = arith.addf %61, %62 : vector<2x32xf32>
    %64 = math.tanh %63 : vector<2x32xf32>
    %65 = arith.mulf %60, %64 : vector<2x32xf32>
    %c2 = arith.constant 2 : index
    %c0_19 = arith.constant 0 : index
    %66 = vector.load %arg9[%c2, %c0_19] : memref<16x32xf32, #tpu.memory_space<vmem>>, vector<2x32xf32>
    tpu.vector_store %arg9[%c2, %c0_19], %65 {strides = array<i32>} : memref<16x32xf32, #tpu.memory_space<vmem>>, vector<2x32xf32>,
    %67 = vector.extract_strided_slice %5 {offsets = [4, 0], sizes = [2, 128], strides = [1, 1]} : vector<16x128xf32> to vector<2x128xf32>
    %cst_20 = arith.constant dense<0.000000e+00> : vector<2x128xf32>
    %68 = tpu.matmul %65, %6, %cst_20 {dimension_numbers = #tpu.dot_dimension_numbers<[1], [0], [0], [1], [0, 0, 1, 1], [], []>} : vector<2x32xf32>, vector<32x128xf32>, vector<2x128xf32> -> vector<2x128xf32>
    %69 = arith.addf %67, %68 : vector<2x128xf32>
    %70 = vector.extract_strided_slice %69 {offsets = [0, 0], sizes = [2, 32], strides = [1, 1]} : vector<2x128xf32> to vector<2x32xf32>
    %71 = arith.negf %70 : vector<2x32xf32>
    %72 = math.exp %71 : vector<2x32xf32>
    %cst_21 = arith.constant 1.000000e+00 : f32
    %73 = vector.broadcast %cst_21 : f32 to vector<2x32xf32>
    %74 = arith.addf %73, %72 : vector<2x32xf32>
    %75 = arith.divf %73, %74 : vector<2x32xf32>
    %76 = vector.extract_strided_slice %69 {offsets = [0, 32], sizes = [2, 32], strides = [1, 1]} : vector<2x128xf32> to vector<2x32xf32>
    %77 = arith.negf %76 : vector<2x32xf32>
    %78 = math.exp %77 : vector<2x32xf32>
    %cst_22 = arith.constant 1.000000e+00 : f32
    %79 = vector.broadcast %cst_22 : f32 to vector<2x32xf32>
    %80 = arith.addf %79, %78 : vector<2x32xf32>
    %81 = arith.divf %79, %80 : vector<2x32xf32>
    %82 = vector.extract_strided_slice %69 {offsets = [0, 64], sizes = [2, 32], strides = [1, 1]} : vector<2x128xf32> to vector<2x32xf32>
    %83 = math.tanh %82 : vector<2x32xf32>
    %84 = vector.extract_strided_slice %69 {offsets = [0, 96], sizes = [2, 32], strides = [1, 1]} : vector<2x128xf32> to vector<2x32xf32>
    %85 = arith.negf %84 : vector<2x32xf32>
    %86 = math.exp %85 : vector<2x32xf32>
    %cst_23 = arith.constant 1.000000e+00 : f32
    %87 = vector.broadcast %cst_23 : f32 to vector<2x32xf32>
    %88 = arith.addf %87, %86 : vector<2x32xf32>
    %89 = arith.divf %87, %88 : vector<2x32xf32>
    %90 = arith.mulf %81, %63 : vector<2x32xf32>
    %91 = arith.mulf %75, %83 : vector<2x32xf32>
    %92 = arith.addf %90, %91 : vector<2x32xf32>
    %93 = math.tanh %92 : vector<2x32xf32>
    %94 = arith.mulf %89, %93 : vector<2x32xf32>
    %c4 = arith.constant 4 : index
    %c0_24 = arith.constant 0 : index
    %95 = vector.load %arg9[%c4, %c0_24] : memref<16x32xf32, #tpu.memory_space<vmem>>, vector<2x32xf32>
    tpu.vector_store %arg9[%c4, %c0_24], %94 {strides = array<i32>} : memref<16x32xf32, #tpu.memory_space<vmem>>, vector<2x32xf32>,
    %96 = vector.extract_strided_slice %5 {offsets = [6, 0], sizes = [2, 128], strides = [1, 1]} : vector<16x128xf32> to vector<2x128xf32>
    %cst_25 = arith.constant dense<0.000000e+00> : vector<2x128xf32>
    %97 = tpu.matmul %94, %6, %cst_25 {dimension_numbers = #tpu.dot_dimension_numbers<[1], [0], [0], [1], [0, 0, 1, 1], [], []>} : vector<2x32xf32>, vector<32x128xf32>, vector<2x128xf32> -> vector<2x128xf32>
    %98 = arith.addf %96, %97 : vector<2x128xf32>
    %99 = vector.extract_strided_slice %98 {offsets = [0, 0], sizes = [2, 32], strides = [1, 1]} : vector<2x128xf32> to vector<2x32xf32>
    %100 = arith.negf %99 : vector<2x32xf32>
    %101 = math.exp %100 : vector<2x32xf32>
    %cst_26 = arith.constant 1.000000e+00 : f32
    %102 = vector.broadcast %cst_26 : f32 to vector<2x32xf32>
    %103 = arith.addf %102, %101 : vector<2x32xf32>
    %104 = arith.divf %102, %103 : vector<2x32xf32>
    %105 = vector.extract_strided_slice %98 {offsets = [0, 32], sizes = [2, 32], strides = [1, 1]} : vector<2x128xf32> to vector<2x32xf32>
    %106 = arith.negf %105 : vector<2x32xf32>
    %107 = math.exp %106 : vector<2x32xf32>
    %cst_27 = arith.constant 1.000000e+00 : f32
    %108 = vector.broadcast %cst_27 : f32 to vector<2x32xf32>
    %109 = arith.addf %108, %107 : vector<2x32xf32>
    %110 = arith.divf %108, %109 : vector<2x32xf32>
    %111 = vector.extract_strided_slice %98 {offsets = [0, 64], sizes = [2, 32], strides = [1, 1]} : vector<2x128xf32> to vector<2x32xf32>
    %112 = math.tanh %111 : vector<2x32xf32>
    %113 = vector.extract_strided_slice %98 {offsets = [0, 96], sizes = [2, 32], strides = [1, 1]} : vector<2x128xf32> to vector<2x32xf32>
    %114 = arith.negf %113 : vector<2x32xf32>
    %115 = math.exp %114 : vector<2x32xf32>
    %cst_28 = arith.constant 1.000000e+00 : f32
    %116 = vector.broadcast %cst_28 : f32 to vector<2x32xf32>
    %117 = arith.addf %116, %115 : vector<2x32xf32>
    %118 = arith.divf %116, %117 : vector<2x32xf32>
    %119 = arith.mulf %110, %92 : vector<2x32xf32>
    %120 = arith.mulf %104, %112 : vector<2x32xf32>
    %121 = arith.addf %119, %120 : vector<2x32xf32>
    %122 = math.tanh %121 : vector<2x32xf32>
    %123 = arith.mulf %118, %122 : vector<2x32xf32>
    %c6 = arith.constant 6 : index
    %c0_29 = arith.constant 0 : index
    %124 = vector.load %arg9[%c6, %c0_29] : memref<16x32xf32, #tpu.memory_space<vmem>>, vector<2x32xf32>
    tpu.vector_store %arg9[%c6, %c0_29], %123 {strides = array<i32>} : memref<16x32xf32, #tpu.memory_space<vmem>>, vector<2x32xf32>,
    %125 = vector.extract_strided_slice %5 {offsets = [8, 0], sizes = [2, 128], strides = [1, 1]} : vector<16x128xf32> to vector<2x128xf32>
    %cst_30 = arith.constant dense<0.000000e+00> : vector<2x128xf32>
    %126 = tpu.matmul %123, %6, %cst_30 {dimension_numbers = #tpu.dot_dimension_numbers<[1], [0], [0], [1], [0, 0, 1, 1], [], []>} : vector<2x32xf32>, vector<32x128xf32>, vector<2x128xf32> -> vector<2x128xf32>
    %127 = arith.addf %125, %126 : vector<2x128xf32>
    %128 = vector.extract_strided_slice %127 {offsets = [0, 0], sizes = [2, 32], strides = [1, 1]} : vector<2x128xf32> to vector<2x32xf32>
    %129 = arith.negf %128 : vector<2x32xf32>
    %130 = math.exp %129 : vector<2x32xf32>
    %cst_31 = arith.constant 1.000000e+00 : f32
    %131 = vector.broadcast %cst_31 : f32 to vector<2x32xf32>
    %132 = arith.addf %131, %130 : vector<2x32xf32>
    %133 = arith.divf %131, %132 : vector<2x32xf32>
    %134 = vector.extract_strided_slice %127 {offsets = [0, 32], sizes = [2, 32], strides = [1, 1]} : vector<2x128xf32> to vector<2x32xf32>
    %135 = arith.negf %134 : vector<2x32xf32>
    %136 = math.exp %135 : vector<2x32xf32>
    %cst_32 = arith.constant 1.000000e+00 : f32
    %137 = vector.broadcast %cst_32 : f32 to vector<2x32xf32>
    %138 = arith.addf %137, %136 : vector<2x32xf32>
    %139 = arith.divf %137, %138 : vector<2x32xf32>
    %140 = vector.extract_strided_slice %127 {offsets = [0, 64], sizes = [2, 32], strides = [1, 1]} : vector<2x128xf32> to vector<2x32xf32>
    %141 = math.tanh %140 : vector<2x32xf32>
    %142 = vector.extract_strided_slice %127 {offsets = [0, 96], sizes = [2, 32], strides = [1, 1]} : vector<2x128xf32> to vector<2x32xf32>
    %143 = arith.negf %142 : vector<2x32xf32>
    %144 = math.exp %143 : vector<2x32xf32>
    %cst_33 = arith.constant 1.000000e+00 : f32
    %145 = vector.broadcast %cst_33 : f32 to vector<2x32xf32>
    %146 = arith.addf %145, %144 : vector<2x32xf32>
    %147 = arith.divf %145, %146 : vector<2x32xf32>
    %148 = arith.mulf %139, %121 : vector<2x32xf32>
    %149 = arith.mulf %133, %141 : vector<2x32xf32>
    %150 = arith.addf %148, %149 : vector<2x32xf32>
    %151 = math.tanh %150 : vector<2x32xf32>
    %152 = arith.mulf %147, %151 : vector<2x32xf32>
    %c8 = arith.constant 8 : index
    %c0_34 = arith.constant 0 : index
    %153 = vector.load %arg9[%c8, %c0_34] : memref<16x32xf32, #tpu.memory_space<vmem>>, vector<2x32xf32>
    tpu.vector_store %arg9[%c8, %c0_34], %152 {strides = array<i32>} : memref<16x32xf32, #tpu.memory_space<vmem>>, vector<2x32xf32>,
    %154 = vector.extract_strided_slice %5 {offsets = [10, 0], sizes = [2, 128], strides = [1, 1]} : vector<16x128xf32> to vector<2x128xf32>
    %cst_35 = arith.constant dense<0.000000e+00> : vector<2x128xf32>
    %155 = tpu.matmul %152, %6, %cst_35 {dimension_numbers = #tpu.dot_dimension_numbers<[1], [0], [0], [1], [0, 0, 1, 1], [], []>} : vector<2x32xf32>, vector<32x128xf32>, vector<2x128xf32> -> vector<2x128xf32>
    %156 = arith.addf %154, %155 : vector<2x128xf32>
    %157 = vector.extract_strided_slice %156 {offsets = [0, 0], sizes = [2, 32], strides = [1, 1]} : vector<2x128xf32> to vector<2x32xf32>
    %158 = arith.negf %157 : vector<2x32xf32>
    %159 = math.exp %158 : vector<2x32xf32>
    %cst_36 = arith.constant 1.000000e+00 : f32
    %160 = vector.broadcast %cst_36 : f32 to vector<2x32xf32>
    %161 = arith.addf %160, %159 : vector<2x32xf32>
    %162 = arith.divf %160, %161 : vector<2x32xf32>
    %163 = vector.extract_strided_slice %156 {offsets = [0, 32], sizes = [2, 32], strides = [1, 1]} : vector<2x128xf32> to vector<2x32xf32>
    %164 = arith.negf %163 : vector<2x32xf32>
    %165 = math.exp %164 : vector<2x32xf32>
    %cst_37 = arith.constant 1.000000e+00 : f32
    %166 = vector.broadcast %cst_37 : f32 to vector<2x32xf32>
    %167 = arith.addf %166, %165 : vector<2x32xf32>
    %168 = arith.divf %166, %167 : vector<2x32xf32>
    %169 = vector.extract_strided_slice %156 {offsets = [0, 64], sizes = [2, 32], strides = [1, 1]} : vector<2x128xf32> to vector<2x32xf32>
    %170 = math.tanh %169 : vector<2x32xf32>
    %171 = vector.extract_strided_slice %156 {offsets = [0, 96], sizes = [2, 32], strides = [1, 1]} : vector<2x128xf32> to vector<2x32xf32>
    %172 = arith.negf %171 : vector<2x32xf32>
    %173 = math.exp %172 : vector<2x32xf32>
    %cst_38 = arith.constant 1.000000e+00 : f32
    %174 = vector.broadcast %cst_38 : f32 to vector<2x32xf32>
    %175 = arith.addf %174, %173 : vector<2x32xf32>
    %176 = arith.divf %174, %175 : vector<2x32xf32>
    %177 = arith.mulf %168, %150 : vector<2x32xf32>
    %178 = arith.mulf %162, %170 : vector<2x32xf32>
    %179 = arith.addf %177, %178 : vector<2x32xf32>
    %180 = math.tanh %179 : vector<2x32xf32>
    %181 = arith.mulf %176, %180 : vector<2x32xf32>
    %c10 = arith.constant 10 : index
    %c0_39 = arith.constant 0 : index
    %182 = vector.load %arg9[%c10, %c0_39] : memref<16x32xf32, #tpu.memory_space<vmem>>, vector<2x32xf32>
    tpu.vector_store %arg9[%c10, %c0_39], %181 {strides = array<i32>} : memref<16x32xf32, #tpu.memory_space<vmem>>, vector<2x32xf32>,
    %183 = vector.extract_strided_slice %5 {offsets = [12, 0], sizes = [2, 128], strides = [1, 1]} : vector<16x128xf32> to vector<2x128xf32>
    %cst_40 = arith.constant dense<0.000000e+00> : vector<2x128xf32>
    %184 = tpu.matmul %181, %6, %cst_40 {dimension_numbers = #tpu.dot_dimension_numbers<[1], [0], [0], [1], [0, 0, 1, 1], [], []>} : vector<2x32xf32>, vector<32x128xf32>, vector<2x128xf32> -> vector<2x128xf32>
    %185 = arith.addf %183, %184 : vector<2x128xf32>
    %186 = vector.extract_strided_slice %185 {offsets = [0, 0], sizes = [2, 32], strides = [1, 1]} : vector<2x128xf32> to vector<2x32xf32>
    %187 = arith.negf %186 : vector<2x32xf32>
    %188 = math.exp %187 : vector<2x32xf32>
    %cst_41 = arith.constant 1.000000e+00 : f32
    %189 = vector.broadcast %cst_41 : f32 to vector<2x32xf32>
    %190 = arith.addf %189, %188 : vector<2x32xf32>
    %191 = arith.divf %189, %190 : vector<2x32xf32>
    %192 = vector.extract_strided_slice %185 {offsets = [0, 32], sizes = [2, 32], strides = [1, 1]} : vector<2x128xf32> to vector<2x32xf32>
    %193 = arith.negf %192 : vector<2x32xf32>
    %194 = math.exp %193 : vector<2x32xf32>
    %cst_42 = arith.constant 1.000000e+00 : f32
    %195 = vector.broadcast %cst_42 : f32 to vector<2x32xf32>
    %196 = arith.addf %195, %194 : vector<2x32xf32>
    %197 = arith.divf %195, %196 : vector<2x32xf32>
    %198 = vector.extract_strided_slice %185 {offsets = [0, 64], sizes = [2, 32], strides = [1, 1]} : vector<2x128xf32> to vector<2x32xf32>
    %199 = math.tanh %198 : vector<2x32xf32>
    %200 = vector.extract_strided_slice %185 {offsets = [0, 96], sizes = [2, 32], strides = [1, 1]} : vector<2x128xf32> to vector<2x32xf32>
    %201 = arith.negf %200 : vector<2x32xf32>
    %202 = math.exp %201 : vector<2x32xf32>
    %cst_43 = arith.constant 1.000000e+00 : f32
    %203 = vector.broadcast %cst_43 : f32 to vector<2x32xf32>
    %204 = arith.addf %203, %202 : vector<2x32xf32>
    %205 = arith.divf %203, %204 : vector<2x32xf32>
    %206 = arith.mulf %197, %179 : vector<2x32xf32>
    %207 = arith.mulf %191, %199 : vector<2x32xf32>
    %208 = arith.addf %206, %207 : vector<2x32xf32>
    %209 = math.tanh %208 : vector<2x32xf32>
    %210 = arith.mulf %205, %209 : vector<2x32xf32>
    %c12 = arith.constant 12 : index
    %c0_44 = arith.constant 0 : index
    %211 = vector.load %arg9[%c12, %c0_44] : memref<16x32xf32, #tpu.memory_space<vmem>>, vector<2x32xf32>
    tpu.vector_store %arg9[%c12, %c0_44], %210 {strides = array<i32>} : memref<16x32xf32, #tpu.memory_space<vmem>>, vector<2x32xf32>,
    %212 = vector.extract_strided_slice %5 {offsets = [14, 0], sizes = [2, 128], strides = [1, 1]} : vector<16x128xf32> to vector<2x128xf32>
    %cst_45 = arith.constant dense<0.000000e+00> : vector<2x128xf32>
    %213 = tpu.matmul %210, %6, %cst_45 {dimension_numbers = #tpu.dot_dimension_numbers<[1], [0], [0], [1], [0, 0, 1, 1], [], []>} : vector<2x32xf32>, vector<32x128xf32>, vector<2x128xf32> -> vector<2x128xf32>
    %214 = arith.addf %212, %213 : vector<2x128xf32>
    %215 = vector.extract_strided_slice %214 {offsets = [0, 0], sizes = [2, 32], strides = [1, 1]} : vector<2x128xf32> to vector<2x32xf32>
    %216 = arith.negf %215 : vector<2x32xf32>
    %217 = math.exp %216 : vector<2x32xf32>
    %cst_46 = arith.constant 1.000000e+00 : f32
    %218 = vector.broadcast %cst_46 : f32 to vector<2x32xf32>
    %219 = arith.addf %218, %217 : vector<2x32xf32>
    %220 = arith.divf %218, %219 : vector<2x32xf32>
    %221 = vector.extract_strided_slice %214 {offsets = [0, 32], sizes = [2, 32], strides = [1, 1]} : vector<2x128xf32> to vector<2x32xf32>
    %222 = arith.negf %221 : vector<2x32xf32>
    %223 = math.exp %222 : vector<2x32xf32>
    %cst_47 = arith.constant 1.000000e+00 : f32
    %224 = vector.broadcast %cst_47 : f32 to vector<2x32xf32>
    %225 = arith.addf %224, %223 : vector<2x32xf32>
    %226 = arith.divf %224, %225 : vector<2x32xf32>
    %227 = vector.extract_strided_slice %214 {offsets = [0, 64], sizes = [2, 32], strides = [1, 1]} : vector<2x128xf32> to vector<2x32xf32>
    %228 = math.tanh %227 : vector<2x32xf32>
    %229 = vector.extract_strided_slice %214 {offsets = [0, 96], sizes = [2, 32], strides = [1, 1]} : vector<2x128xf32> to vector<2x32xf32>
    %230 = arith.negf %229 : vector<2x32xf32>
    %231 = math.exp %230 : vector<2x32xf32>
    %cst_48 = arith.constant 1.000000e+00 : f32
    %232 = vector.broadcast %cst_48 : f32 to vector<2x32xf32>
    %233 = arith.addf %232, %231 : vector<2x32xf32>
    %234 = arith.divf %232, %233 : vector<2x32xf32>
    %235 = arith.mulf %226, %208 : vector<2x32xf32>
    %236 = arith.mulf %220, %228 : vector<2x32xf32>
    %237 = arith.addf %235, %236 : vector<2x32xf32>
    %238 = math.tanh %237 : vector<2x32xf32>
    %239 = arith.mulf %234, %238 : vector<2x32xf32>
    %c14 = arith.constant 14 : index
    %c0_49 = arith.constant 0 : index
    %240 = vector.load %arg9[%c14, %c0_49] : memref<16x32xf32, #tpu.memory_space<vmem>>, vector<2x32xf32>
    tpu.vector_store %arg9[%c14, %c0_49], %239 {strides = array<i32>} : memref<16x32xf32, #tpu.memory_space<vmem>>, vector<2x32xf32>,
    %c0_50 = arith.constant 0 : index
    %c0_51 = arith.constant 0 : index
    %241 = vector.load %arg9[%c0_50, %c0_51] : memref<16x32xf32, #tpu.memory_space<vmem>>, vector<16x32xf32>
    %cst_52 = arith.constant 0.000000e+00 : f32
    %242 = vector.broadcast %cst_52 : f32 to vector<16x32xf32>
    %243 = arith.maximumf %241, %242 : vector<16x32xf32>
    %c0_53 = arith.constant 0 : index
    %c0_54 = arith.constant 0 : index
    %244 = vector.load %arg4[%c0_53, %c0_54] : memref<32x16xf32, #tpu.memory_space<vmem>>, vector<32x16xf32>
    %cst_55 = arith.constant dense<0.000000e+00> : vector<16x16xf32>
    %245 = tpu.matmul %243, %244, %cst_55 {dimension_numbers = #tpu.dot_dimension_numbers<[1], [0], [0], [1], [0, 0, 1, 1], [], []>} : vector<16x32xf32>, vector<32x16xf32>, vector<16x16xf32> -> vector<16x16xf32>
    %c0_56 = arith.constant 0 : index
    %c0_57 = arith.constant 0 : index
    %246 = vector.load %arg5[%c0_56, %c0_57] : memref<1x16xf32, #tpu.memory_space<vmem>>, vector<1x16xf32>
    %247 = vector.broadcast %246 : vector<1x16xf32> to vector<16x16xf32>
    %248 = arith.addf %245, %247 : vector<16x16xf32>
    %cst_58 = arith.constant 0.000000e+00 : f32
    %249 = vector.broadcast %cst_58 : f32 to vector<16x16xf32>
    %250 = arith.maximumf %248, %249 : vector<16x16xf32>
    %c0_59 = arith.constant 0 : index
    %c0_60 = arith.constant 0 : index
    %251 = vector.load %arg6[%c0_59, %c0_60] : memref<16x2xf32, #tpu.memory_space<vmem>>, vector<16x2xf32>
    %cst_61 = arith.constant dense<0.000000e+00> : vector<16x2xf32>
    %252 = tpu.matmul %250, %251, %cst_61 {dimension_numbers = #tpu.dot_dimension_numbers<[1], [0], [0], [1], [0, 0, 1, 1], [], []>} : vector<16x16xf32>, vector<16x2xf32>, vector<16x2xf32> -> vector<16x2xf32>
    %c0_62 = arith.constant 0 : index
    %c0_63 = arith.constant 0 : index
    %253 = vector.load %arg7[%c0_62, %c0_63] : memref<1x2xf32, #tpu.memory_space<vmem>>, vector<1x2xf32>
    %254 = vector.broadcast %253 : vector<1x2xf32> to vector<16x2xf32>
    %255 = arith.addf %252, %254 : vector<16x2xf32>
    %c0_64 = arith.constant 0 : index
    %c0_65 = arith.constant 0 : index
    %256 = vector.load %arg8[%c0_64, %c0_65] : memref<16x2xf32, #tpu.memory_space<vmem>>, vector<16x2xf32>
    tpu.vector_store %arg8[%c0_64, %c0_65], %255 {strides = array<i32>} : memref<16x2xf32, #tpu.memory_space<vmem>>, vector<16x2xf32>,
    return
  }
}

</mosaic_0001>

<llo_original>
// kernel: tpu_custom_call.1
$region0: #{tpu_custom_call.1}
  #allocation0 [shape = 'u32[]', space=smem, size = 0x4, offset = 0x4, fixed_abs, tag = 'smem constant byte address 0x4 - core index']
  #allocation1 [shape = 'u32[144,128]{1,0:T(1,128)}', space=vmem, size = 0x12000, scoped, tag = 'internal scratch']
  #allocation2 [shape = 'f32[16,32]{1,0:T(8,128)}', space=vmem, size = 0x2000, scoped, tag = 'scratch operand']
  %s0 = inlined_call_operand.vmem [shape: f32[16,10], index: 0, kind: input, shape index: {}]
  %s1 = inlined_call_operand.vmem [shape: f32[10,128], index: 1, kind: input, shape index: {}]
  %s2 = inlined_call_operand.vmem [shape: f32[32,128], index: 2, kind: input, shape index: {}]
  %s3 = inlined_call_operand.vmem [shape: f32[1,128], index: 3, kind: input, shape index: {}]
  %s4 = inlined_call_operand.vmem [shape: f32[32,16], index: 4, kind: input, shape index: {}]
  %s5 = inlined_call_operand.vmem [shape: f32[1,16], index: 5, kind: input, shape index: {}]
  %s6 = inlined_call_operand.vmem [shape: f32[16,2], index: 6, kind: input, shape index: {}]
  %s7 = inlined_call_operand.vmem [shape: f32[1,2], index: 7, kind: input, shape index: {}]
  %s8 = inlined_call_operand.vmem [shape: f32[16,2], index: 8, kind: output, shape index: {}]
  %s9 = sld [smem:[#allocation0]]
  $region42: #{tpu_custom_call.1} parent=0
    _
  %s11 = ssub.s32 1, %s9
  %s12 = scalar_select 0, %s11, %s9
  // Predicated region
  $region2: #{tpu_custom_call.1} parent=0 // pred_check
    _
  $region3: #{tpu_custom_call.1} parent=0 // pred_check_branch
    %14 = sbr.rel (0) target = $region5
  $region4: #{tpu_custom_call.1} parent=0 // pred_region
    _
  $region5: #{tpu_custom_call.1} parent=0 // pred_fallthru
    _
  // Predicated region
  $region6: #{tpu_custom_call.1} parent=0 // pred_check
    _
  $region7: #{tpu_custom_call.1} parent=0 // pred_check_branch
    %16 = sbr.rel (0) target = $region9
  $region8: #{tpu_custom_call.1} parent=0 // pred_region
    _
  $region9: #{tpu_custom_call.1} parent=0 // pred_fallthru
    _
  // Predicated region
  $region10: #{tpu_custom_call.1} parent=0 // pred_check
    _
  $region11: #{tpu_custom_call.1} parent=0 // pred_check_branch
    %18 = sbr.rel (0) target = $region13
  $region12: #{tpu_custom_call.1} parent=0 // pred_region
    _
  $region13: #{tpu_custom_call.1} parent=0 // pred_fallthru
    _
  // Predicated region
  $region14: #{tpu_custom_call.1} parent=0 // pred_check
    _
  $region15: #{tpu_custom_call.1} parent=0 // pred_check_branch
    %20 = sbr.rel (0) target = $region17
  $region16: #{tpu_custom_call.1} parent=0 // pred_region
    _
  $region17: #{tpu_custom_call.1} parent=0 // pred_fallthru
    _
  // Predicated region
  $region18: #{tpu_custom_call.1} parent=0 // pred_check
    _
  $region19: #{tpu_custom_call.1} parent=0 // pred_check_branch
    %22 = sbr.rel (0) target = $region21
  $region20: #{tpu_custom_call.1} parent=0 // pred_region
    _
  $region21: #{tpu_custom_call.1} parent=0 // pred_fallthru
    _
  // Predicated region
  $region22: #{tpu_custom_call.1} parent=0 // pred_check
    _
  $region23: #{tpu_custom_call.1} parent=0 // pred_check_branch
    %24 = sbr.rel (0) target = $region25
  $region24: #{tpu_custom_call.1} parent=0 // pred_region
    _
  $region25: #{tpu_custom_call.1} parent=0 // pred_fallthru
    _
  // Predicated region
  $region26: #{tpu_custom_call.1} parent=0 // pred_check
    _
  $region27: #{tpu_custom_call.1} parent=0 // pred_check_branch
    %26 = sbr.rel (0) target = $region29
  $region28: #{tpu_custom_call.1} parent=0 // pred_region
    _
  $region29: #{tpu_custom_call.1} parent=0 // pred_fallthru
    _
  // Predicated region
  $region30: #{tpu_custom_call.1} parent=0 // pred_check
    _
  $region31: #{tpu_custom_call.1} parent=0 // pred_check_branch
    %28 = sbr.rel (0) target = $region33
  $region32: #{tpu_custom_call.1} parent=0 // pred_region
    _
  $region33: #{tpu_custom_call.1} parent=0 // pred_fallthru
    _
  %v29 = vld [vmem:[%s0] sm:$0xff]
  %v30 = vld [vmem:[%s0 + $0x8] sm:$0xff]
  %v31 = vld [vmem:[%s1] sm:$0xff]
  %v32 = vld [vmem:[%s1 + $0x8] sm:$0x3]
  %v33 = vld [vmem:[%s3] sm:$0x1]
  %v35 = vlaneseq
  %v36 = vshrl.u32 %v35, 7
  %v37 = vsub.s32 0, %v36
  %v38 = vrot.slane %v33, %v37
  %vm40 = vcmask 80896
  %v42 = vsel %vm40, %v29, 0
  %v45 = vsel %vm40, %v30, 0
  %vm47 = vcmask 1041408
  %v49 = vsel %vm47, %v32, 0
  %51 = vmatprep.subr.mxu0 0.0
  %52 = vmatpush1.msra.mxu0 0.0
  %53 = vmatprep.subr.mxu0 0.0
  %54 = vmatpush1.msra.mxu0 0.0
  %55 = vmatprep.subr.mxu0 0.0
  %56 = vmatpush1.msra.mxu0 0.0
  %57 = vmatprep.subr.mxu0 0.0
  %58 = vmatpush1.msra.mxu0 0.0
  %59 = vmatprep.subr.mxu0 0.0
  %60 = vmatpush1.msra.mxu0 0.0
  %61 = vmatprep.subr.mxu0 0.0
  %62 = vmatpush1.msra.mxu0 0.0
  %63 = vmatprep.subr.mxu0 0.0
  %64 = vmatpush1.msra.mxu0 0.0
  %65 = vmatprep.subr.mxu0 0.0
  %66 = vmatpush1.msra.mxu0 0.0
  %67 = vmatprep.subr.mxu0 0.0
  %68 = vmatpush1.msra.mxu0 0.0
  %69 = vmatprep.subr.mxu0 0.0
  %70 = vmatpush1.msra.mxu0 0.0
  %71 = vmatprep.subr.mxu0 0.0
  %72 = vmatpush1.msra.mxu0 0.0
  %73 = vmatprep.subr.mxu0 0.0
  %74 = vmatpush1.msra.mxu0 0.0
  %75 = vmatprep.subr.mxu0 0.0
  %76 = vmatpush1.msra.mxu0 0.0
  %77 = vmatprep.subr.mxu0 0.0
  %78 = vmatpush1.msra.mxu0 0.0
  %79 = vmatprep.subr.mxu0 0.0
  %80 = vmatpush1.msra.mxu0 %v49
  %81 = vmatprep.subr.mxu0 0.0
  %82 = vmatpush1.msra.mxu0 %v31
  %83 = vmatprep.subr.mxu0 0.0
  %84 = vmatpush2.msra.mxu0 0.0
  %85 = vmatprep.subr.mxu0 0.0
  %86 = vmatpush2.msra.mxu0 0.0
  %87 = vmatprep.subr.mxu0 0.0
  %88 = vmatpush2.msra.mxu0 0.0
  %89 = vmatprep.subr.mxu0 0.0
  %90 = vmatpush2.msra.mxu0 0.0
  %91 = vmatprep.subr.mxu0 0.0
  %92 = vmatpush2.msra.mxu0 0.0
  %93 = vmatprep.subr.mxu0 0.0
  %94 = vmatpush2.msra.mxu0 0.0
  %95 = vmatprep.subr.mxu0 0.0
  %96 = vmatpush2.msra.mxu0 0.0
  %97 = vmatprep.subr.mxu0 0.0
  %98 = vmatpush2.msra.mxu0 0.0
  %99 = vmatprep.subr.mxu0 0.0
  %100 = vmatpush2.msra.mxu0 0.0
  %101 = vmatprep.subr.mxu0 0.0
  %102 = vmatpush2.msra.mxu0 0.0
  %103 = vmatprep.subr.mxu0 0.0
  %104 = vmatpush2.msra.mxu0 0.0
  %105 = vmatprep.subr.mxu0 0.0
  %106 = vmatpush2.msra.mxu0 0.0
  %107 = vmatprep.subr.mxu0 0.0
  %108 = vmatpush2.msra.mxu0 0.0
  %109 = vmatprep.subr.mxu0 0.0
  %110 = vmatpush2.msra.mxu0 0.0
  %111 = vmatprep.subr.mxu0 0.0
  %112 = vmatpush2.msra.mxu0 0.0
  %113 = vmatprep.subr.mxu0 0.0
  %114 = vmatpush2.msra.mxu0 0.0
  %115 = vmatprep.mubr.f32.mxu0 0.0
  %116 = vmatmul.mubr.f32.gmra.mxu0 %v42
  %v117 = vpop.f32.mrf.mxu0
  %v118 = vadd.f32 %v38, %v117
  %v119 = vpop.f32.mrf.mxu0
  %120 = vmatprep.mubr.f32.mxu0 0.0
  %121 = vmatmul.mubr.f32.gmra.mxu0 %v45
  %v122 = vpop.f32.mrf.mxu0
  %v123 = vadd.f32 %v38, %v122
  %v124 = vpop.f32.mrf.mxu0
  %125 = vdwg.mxu0
  %v126 = vld [vmem:[%s2] sm:$0xff]
  %v127 = vld [vmem:[%s2 + $0x8] sm:$0xff]
  %v128 = vld [vmem:[%s2 + $0x10] sm:$0xff]
  %v129 = vld [vmem:[%s2 + $0x18] sm:$0xff]
  %vm130 = vcmask 261120
  %v132 = vsel %vm130, 0.0, 0
  %134 = vmatprep.subr.mxu0 0.0
  %135 = vmatpush1.msra.mxu0 0.0
  %136 = vmatprep.subr.mxu0 0.0
  %137 = vmatpush1.msra.mxu0 0.0
  %138 = vmatprep.subr.mxu0 0.0
  %139 = vmatpush1.msra.mxu0 0.0
  %140 = vmatprep.subr.mxu0 0.0
  %141 = vmatpush1.msra.mxu0 0.0
  %142 = vmatprep.subr.mxu0 0.0
  %143 = vmatpush1.msra.mxu0 0.0
  %144 = vmatprep.subr.mxu0 0.0
  %145 = vmatpush1.msra.mxu0 0.0
  %146 = vmatprep.subr.mxu0 0.0
  %147 = vmatpush1.msra.mxu0 0.0
  %148 = vmatprep.subr.mxu0 0.0
  %149 = vmatpush1.msra.mxu0 0.0
  %150 = vmatprep.subr.mxu0 0.0
  %151 = vmatpush1.msra.mxu0 0.0
  %152 = vmatprep.subr.mxu0 0.0
  %153 = vmatpush1.msra.mxu0 0.0
  %154 = vmatprep.subr.mxu0 0.0
  %155 = vmatpush1.msra.mxu0 0.0
  %156 = vmatprep.subr.mxu0 0.0
  %157 = vmatpush1.msra.mxu0 0.0
  %158 = vmatprep.subr.mxu0 0.0
  %159 = vmatpush1.msra.mxu0 %v129
  %160 = vmatprep.subr.mxu0 0.0
  %161 = vmatpush1.msra.mxu0 %v128
  %162 = vmatprep.subr.mxu0 0.0
  %163 = vmatpush1.msra.mxu0 %v127
  %164 = vmatprep.subr.mxu0 0.0
  %165 = vmatpush1.msra.mxu0 %v126
  %166 = vmatprep.subr.mxu0 0.0
  %167 = vmatpush2.msra.mxu0 0.0
  %168 = vmatprep.subr.mxu0 0.0
  %169 = vmatpush2.msra.mxu0 0.0
  %170 = vmatprep.subr.mxu0 0.0
  %171 = vmatpush2.msra.mxu0 0.0
  %172 = vmatprep.subr.mxu0 0.0
  %173 = vmatpush2.msra.mxu0 0.0
  %174 = vmatprep.subr.mxu0 0.0
  %175 = vmatpush2.msra.mxu0 0.0
  %176 = vmatprep.subr.mxu0 0.0
  %177 = vmatpush2.msra.mxu0 0.0
  %178 = vmatprep.subr.mxu0 0.0
  %179 = vmatpush2.msra.mxu0 0.0
  %180 = vmatprep.subr.mxu0 0.0
  %181 = vmatpush2.msra.mxu0 0.0
  %182 = vmatprep.subr.mxu0 0.0
  %183 = vmatpush2.msra.mxu0 0.0
  %184 = vmatprep.subr.mxu0 0.0
  %185 = vmatpush2.msra.mxu0 0.0
  %186 = vmatprep.subr.mxu0 0.0
  %187 = vmatpush2.msra.mxu0 0.0
  %188 = vmatprep.subr.mxu0 0.0
  %189 = vmatpush2.msra.mxu0 0.0
  %190 = vmatprep.subr.mxu0 0.0
  %191 = vmatpush2.msra.mxu0 0.0
  %192 = vmatprep.subr.mxu0 0.0
  %193 = vmatpush2.msra.mxu0 0.0
  %194 = vmatprep.subr.mxu0 0.0
  %195 = vmatpush2.msra.mxu0 0.0
  %196 = vmatprep.subr.mxu0 0.0
  %197 = vmatpush2.msra.mxu0 0.0
  %198 = vmatprep.mubr.f32.mxu0 0.0
  %199 = vmatmul.mubr.f32.gmra.mxu0 %v132
  %v200 = vpop.f32.mrf.mxu0
  %v201 = vadd.f32 0.0, %v200
  %v202 = vpop.f32.mrf.mxu0
  %203 = vdwg.mxu0
  %v204 = vadd.f32 %v118, %v201
  %v205 = vxor.u32 %v204, 2147483648
  %v206 = vmul.f32 %v205, 1.442695
  %v207 = vpow.pop %v206
  %v208 = vadd.f32 %v207, 1.0
  %v209 = vrcp.pop %v208
  %v210 = vmul.f32 1.0, %v209
  %v211 = vtanh.pop %v204
  %v212 = vmul.f32 %v210, 0.0
  %214 = vrot.lane.b32.xlu0 %v211, 64
  %v215 = vpop.permute.xlu0 %214
  %v217 = vmul.f32 %v210, %v215
  %219 = vrot.lane.b32.xlu0 %v217, 32
  %v220 = vpop.permute.xlu0 %219
  %v222 = vadd.f32 %v212, %v220
  %v223 = vtanh.pop %v222
  %225 = vrot.lane.b32.xlu0 %v223, 64
  %v226 = vpop.permute.xlu0 %225
  %v228 = vmul.f32 %v210, %v226
  %230 = vrot.lane.b32.xlu0 %v228, 32
  %v231 = vpop.permute.xlu0 %230
  %vm233 = vcmask 254976
  %234 = vst.msk [vmem:[#allocation2] sm:$0x3] %vm233, %v231
  %v235 = vsel %vm130, %v231, 0
  %237 = vmatprep.subr.mxu0 0.0
  %238 = vmatpush1.msra.mxu0 0.0
  %239 = vmatprep.subr.mxu0 0.0
  %240 = vmatpush1.msra.mxu0 0.0
  %241 = vmatprep.subr.mxu0 0.0
  %242 = vmatpush1.msra.mxu0 0.0
  %243 = vmatprep.subr.mxu0 0.0
  %244 = vmatpush1.msra.mxu0 0.0
  %245 = vmatprep.subr.mxu0 0.0
  %246 = vmatpush1.msra.mxu0 0.0
  %247 = vmatprep.subr.mxu0 0.0
  %248 = vmatpush1.msra.mxu0 0.0
  %249 = vmatprep.subr.mxu0 0.0
  %250 = vmatpush1.msra.mxu0 0.0
  %251 = vmatprep.subr.mxu0 0.0
  %252 = vmatpush1.msra.mxu0 0.0
  %253 = vmatprep.subr.mxu0 0.0
  %254 = vmatpush1.msra.mxu0 0.0
  %255 = vmatprep.subr.mxu0 0.0
  %256 = vmatpush1.msra.mxu0 0.0
  %257 = vmatprep.subr.mxu0 0.0
  %258 = vmatpush1.msra.mxu0 0.0
  %259 = vmatprep.subr.mxu0 0.0
  %260 = vmatpush1.msra.mxu0 0.0
  %261 = vmatprep.subr.mxu0 0.0
  %262 = vmatpush1.msra.mxu0 %v129
  %263 = vmatprep.subr.mxu0 0.0
  %264 = vmatpush1.msra.mxu0 %v128
  %265 = vmatprep.subr.mxu0 0.0
  %266 = vmatpush1.msra.mxu0 %v127
  %267 = vmatprep.subr.mxu0 0.0
  %268 = vmatpush1.msra.mxu0 %v126
  %269 = vmatprep.subr.mxu0 0.0
  %270 = vmatpush2.msra.mxu0 0.0
  %271 = vmatprep.subr.mxu0 0.0
  %272 = vmatpush2.msra.mxu0 0.0
  %273 = vmatprep.subr.mxu0 0.0
  %274 = vmatpush2.msra.mxu0 0.0
  %275 = vmatprep.subr.mxu0 0.0
  %276 = vmatpush2.msra.mxu0 0.0
  %277 = vmatprep.subr.mxu0 0.0
  %278 = vmatpush2.msra.mxu0 0.0
  %279 = vmatprep.subr.mxu0 0.0
  %280 = vmatpush2.msra.mxu0 0.0
  %281 = vmatprep.subr.mxu0 0.0
  %282 = vmatpush2.msra.mxu0 0.0
  %283 = vmatprep.subr.mxu0 0.0
  %284 = vmatpush2.msra.mxu0 0.0
  %285 = vmatprep.subr.mxu0 0.0
  %286 = vmatpush2.msra.mxu0 0.0
  %287 = vmatprep.subr.mxu0 0.0
  %288 = vmatpush2.msra.mxu0 0.0
  %289 = vmatprep.subr.mxu0 0.0
  %290 = vmatpush2.msra.mxu0 0.0
  %291 = vmatprep.subr.mxu0 0.0
  %292 = vmatpush2.msra.mxu0 0.0
  %293 = vmatprep.subr.mxu0 0.0
  %294 = vmatpush2.msra.mxu0 0.0
  %295 = vmatprep.subr.mxu0 0.0
  %296 = vmatpush2.msra.mxu0 0.0
  %297 = vmatprep.subr.mxu0 0.0
  %298 = vmatpush2.msra.mxu0 0.0
  %299 = vmatprep.subr.mxu0 0.0
  %300 = vmatpush2.msra.mxu0 0.0
  %301 = vmatprep.mubr.f32.mxu0 0.0
  %302 = vmatmul.mubr.f32.gmra.mxu0 %v235
  %v303 = vpop.f32.mrf.mxu0
  %v304 = vadd.f32 0.0, %v303
  %v305 = vpop.f32.mrf.mxu0
  %306 = vdwg.mxu0
  %v308 = vrot.slane %v304, 6
  %v310 = vadd.f32 %v118, %v308
  %v311 = vxor.u32 %v310, 2147483648
  %v312 = vmul.f32 %v311, 1.442695
  %v313 = vpow.pop %v312
  %v314 = vadd.f32 %v313, 1.0
  %v315 = vrcp.pop %v314
  %v316 = vmul.f32 1.0, %v315
  %v317 = vtanh.pop %v310
  %v319 = vrot.slane %v222, 6
  %v321 = vmul.f32 %v316, %v319
  %323 = vrot.lane.b32.xlu0 %v317, 64
  %v324 = vpop.permute.xlu0 %323
  %v326 = vmul.f32 %v316, %v324
  %328 = vrot.lane.b32.xlu0 %v326, 32
  %v329 = vpop.permute.xlu0 %328
  %v331 = vadd.f32 %v321, %v329
  %v332 = vtanh.pop %v331
  %334 = vrot.lane.b32.xlu0 %v332, 64
  %v335 = vpop.permute.xlu0 %334
  %v337 = vmul.f32 %v316, %v335
  %339 = vrot.lane.b32.xlu0 %v337, 32
  %v340 = vpop.permute.xlu0 %339
  %vm342 = vcmask 257026
  %343 = vst.msk [vmem:[#allocation2] sm:$0xc] %vm342, %v340
  %v344 = vrot.slane %v337, 2
  %345 = vrot.lane.b32.xlu0 %v344, 32
  %v346 = vpop.permute.xlu0 %345
  %v347 = vsel %vm130, %v346, 0
  %349 = vmatprep.subr.mxu0 0.0
  %350 = vmatpush1.msra.mxu0 0.0
  %351 = vmatprep.subr.mxu0 0.0
  %352 = vmatpush1.msra.mxu0 0.0
  %353 = vmatprep.subr.mxu0 0.0
  %354 = vmatpush1.msra.mxu0 0.0
  %355 = vmatprep.subr.mxu0 0.0
  %356 = vmatpush1.msra.mxu0 0.0
  %357 = vmatprep.subr.mxu0 0.0
  %358 = vmatpush1.msra.mxu0 0.0
  %359 = vmatprep.subr.mxu0 0.0
  %360 = vmatpush1.msra.mxu0 0.0
  %361 = vmatprep.subr.mxu0 0.0
  %362 = vmatpush1.msra.mxu0 0.0
  %363 = vmatprep.subr.mxu0 0.0
  %364 = vmatpush1.msra.mxu0 0.0
  %365 = vmatprep.subr.mxu0 0.0
  %366 = vmatpush1.msra.mxu0 0.0
  %367 = vmatprep.subr.mxu0 0.0
  %368 = vmatpush1.msra.mxu0 0.0
  %369 = vmatprep.subr.mxu0 0.0
  %370 = vmatpush1.msra.mxu0 0.0
  %371 = vmatprep.subr.mxu0 0.0
  %372 = vmatpush1.msra.mxu0 0.0
  %373 = vmatprep.subr.mxu0 0.0
  %374 = vmatpush1.msra.mxu0 %v129
  %375 = vmatprep.subr.mxu0 0.0
  %376 = vmatpush1.msra.mxu0 %v128
  %377 = vmatprep.subr.mxu0 0.0
  %378 = vmatpush1.msra.mxu0 %v127
  %379 = vmatprep.subr.mxu0 0.0
  %380 = vmatpush1.msra.mxu0 %v126
  %381 = vmatprep.subr.mxu0 0.0
  %382 = vmatpush2.msra.mxu0 0.0
  %383 = vmatprep.subr.mxu0 0.0
  %384 = vmatpush2.msra.mxu0 0.0
  %385 = vmatprep.subr.mxu0 0.0
  %386 = vmatpush2.msra.mxu0 0.0
  %387 = vmatprep.subr.mxu0 0.0
  %388 = vmatpush2.msra.mxu0 0.0
  %389 = vmatprep.subr.mxu0 0.0
  %390 = vmatpush2.msra.mxu0 0.0
  %391 = vmatprep.subr.mxu0 0.0
  %392 = vmatpush2.msra.mxu0 0.0
  %393 = vmatprep.subr.mxu0 0.0
  %394 = vmatpush2.msra.mxu0 0.0
  %395 = vmatprep.subr.mxu0 0.0
  %396 = vmatpush2.msra.mxu0 0.0
  %397 = vmatprep.subr.mxu0 0.0
  %398 = vmatpush2.msra.mxu0 0.0
  %399 = vmatprep.subr.mxu0 0.0
  %400 = vmatpush2.msra.mxu0 0.0
  %401 = vmatprep.subr.mxu0 0.0
  %402 = vmatpush2.msra.mxu0 0.0
  %403 = vmatprep.subr.mxu0 0.0
  %404 = vmatpush2.msra.mxu0 0.0
  %405 = vmatprep.subr.mxu0 0.0
  %406 = vmatpush2.msra.mxu0 0.0
  %407 = vmatprep.subr.mxu0 0.0
  %408 = vmatpush2.msra.mxu0 0.0
  %409 = vmatprep.subr.mxu0 0.0
  %410 = vmatpush2.msra.mxu0 0.0
  %411 = vmatprep.subr.mxu0 0.0
  %412 = vmatpush2.msra.mxu0 0.0
  %413 = vmatprep.mubr.f32.mxu0 0.0
  %414 = vmatmul.mubr.f32.gmra.mxu0 %v347
  %v415 = vpop.f32.mrf.mxu0
  %v416 = vadd.f32 0.0, %v415
  %v417 = vpop.f32.mrf.mxu0
  %418 = vdwg.mxu0
  %v420 = vrot.slane %v416, 4
  %v422 = vadd.f32 %v118, %v420
  %v423 = vxor.u32 %v422, 2147483648
  %v424 = vmul.f32 %v423, 1.442695
  %v425 = vpow.pop %v424
  %v426 = vadd.f32 %v425, 1.0
  %v427 = vrcp.pop %v426
  %v428 = vmul.f32 1.0, %v427
  %v429 = vtanh.pop %v422
  %v431 = vrot.slane %v331, 6
  %v433 = vmul.f32 %v428, %v431
  %435 = vrot.lane.b32.xlu0 %v429, 64
  %v436 = vpop.permute.xlu0 %435
  %v438 = vmul.f32 %v428, %v436
  %440 = vrot.lane.b32.xlu0 %v438, 32
  %v441 = vpop.permute.xlu0 %440
  %v443 = vadd.f32 %v433, %v441
  %v444 = vtanh.pop %v443
  %446 = vrot.lane.b32.xlu0 %v444, 64
  %v447 = vpop.permute.xlu0 %446
  %v449 = vmul.f32 %v428, %v447
  %451 = vrot.lane.b32.xlu0 %v449, 32
  %v452 = vpop.permute.xlu0 %451
  %vm454 = vcmask 259076
  %455 = vst.msk [vmem:[#allocation2] sm:$0x30] %vm454, %v452
  %v456 = vrot.slane %v449, 4
  %457 = vrot.lane.b32.xlu0 %v456, 32
  %v458 = vpop.permute.xlu0 %457
  %v459 = vsel %vm130, %v458, 0
  %461 = vmatprep.subr.mxu0 0.0
  %462 = vmatpush1.msra.mxu0 0.0
  %463 = vmatprep.subr.mxu0 0.0
  %464 = vmatpush1.msra.mxu0 0.0
  %465 = vmatprep.subr.mxu0 0.0
  %466 = vmatpush1.msra.mxu0 0.0
  %467 = vmatprep.subr.mxu0 0.0
  %468 = vmatpush1.msra.mxu0 0.0
  %469 = vmatprep.subr.mxu0 0.0
  %470 = vmatpush1.msra.mxu0 0.0
  %471 = vmatprep.subr.mxu0 0.0
  %472 = vmatpush1.msra.mxu0 0.0
  %473 = vmatprep.subr.mxu0 0.0
  %474 = vmatpush1.msra.mxu0 0.0
  %475 = vmatprep.subr.mxu0 0.0
  %476 = vmatpush1.msra.mxu0 0.0
  %477 = vmatprep.subr.mxu0 0.0
  %478 = vmatpush1.msra.mxu0 0.0
  %479 = vmatprep.subr.mxu0 0.0
  %480 = vmatpush1.msra.mxu0 0.0
  %481 = vmatprep.subr.mxu0 0.0
  %482 = vmatpush1.msra.mxu0 0.0
  %483 = vmatprep.subr.mxu0 0.0
  %484 = vmatpush1.msra.mxu0 0.0
  %485 = vmatprep.subr.mxu0 0.0
  %486 = vmatpush1.msra.mxu0 %v129
  %487 = vmatprep.subr.mxu0 0.0
  %488 = vmatpush1.msra.mxu0 %v128
  %489 = vmatprep.subr.mxu0 0.0
  %490 = vmatpush1.msra.mxu0 %v127
  %491 = vmatprep.subr.mxu0 0.0
  %492 = vmatpush1.msra.mxu0 %v126
  %493 = vmatprep.subr.mxu0 0.0
  %494 = vmatpush2.msra.mxu0 0.0
  %495 = vmatprep.subr.mxu0 0.0
  %496 = vmatpush2.msra.mxu0 0.0
  %497 = vmatprep.subr.mxu0 0.0
  %498 = vmatpush2.msra.mxu0 0.0
  %499 = vmatprep.subr.mxu0 0.0
  %500 = vmatpush2.msra.mxu0 0.0
  %501 = vmatprep.subr.mxu0 0.0
  %502 = vmatpush2.msra.mxu0 0.0
  %503 = vmatprep.subr.mxu0 0.0
  %504 = vmatpush2.msra.mxu0 0.0
  %505 = vmatprep.subr.mxu0 0.0
  %506 = vmatpush2.msra.mxu0 0.0
  %507 = vmatprep.subr.mxu0 0.0
  %508 = vmatpush2.msra.mxu0 0.0
  %509 = vmatprep.subr.mxu0 0.0
  %510 = vmatpush2.msra.mxu0 0.0
  %511 = vmatprep.subr.mxu0 0.0
  %512 = vmatpush2.msra.mxu0 0.0
  %513 = vmatprep.subr.mxu0 0.0
  %514 = vmatpush2.msra.mxu0 0.0
  %515 = vmatprep.subr.mxu0 0.0
  %516 = vmatpush2.msra.mxu0 0.0
  %517 = vmatprep.subr.mxu0 0.0
  %518 = vmatpush2.msra.mxu0 0.0
  %519 = vmatprep.subr.mxu0 0.0
  %520 = vmatpush2.msra.mxu0 0.0
  %521 = vmatprep.subr.mxu0 0.0
  %522 = vmatpush2.msra.mxu0 0.0
  %523 = vmatprep.subr.mxu0 0.0
  %524 = vmatpush2.msra.mxu0 0.0
  %525 = vmatprep.mubr.f32.mxu0 0.0
  %526 = vmatmul.mubr.f32.gmra.mxu0 %v459
  %v527 = vpop.f32.mrf.mxu0
  %v528 = vadd.f32 0.0, %v527
  %v529 = vpop.f32.mrf.mxu0
  %530 = vdwg.mxu0
  %v532 = vrot.slane %v528, 2
  %v534 = vadd.f32 %v118, %v532
  %v535 = vxor.u32 %v534, 2147483648
  %v536 = vmul.f32 %v535, 1.442695
  %v537 = vpow.pop %v536
  %v538 = vadd.f32 %v537, 1.0
  %v539 = vrcp.pop %v538
  %v540 = vmul.f32 1.0, %v539
  %v541 = vtanh.pop %v534
  %v543 = vrot.slane %v443, 6
  %v545 = vmul.f32 %v540, %v543
  %547 = vrot.lane.b32.xlu0 %v541, 64
  %v548 = vpop.permute.xlu0 %547
  %v550 = vmul.f32 %v540, %v548
  %552 = vrot.lane.b32.xlu0 %v550, 32
  %v553 = vpop.permute.xlu0 %552
  %v555 = vadd.f32 %v545, %v553
  %v556 = vtanh.pop %v555
  %558 = vrot.lane.b32.xlu0 %v556, 64
  %v559 = vpop.permute.xlu0 %558
  %v561 = vmul.f32 %v540, %v559
  %563 = vrot.lane.b32.xlu0 %v561, 32
  %v564 = vpop.permute.xlu0 %563
  %vm566 = vcmask 261126
  %567 = vst.msk [vmem:[#allocation2] sm:$0xc0] %vm566, %v564
  %v568 = vrot.slane %v561, 6
  %569 = vrot.lane.b32.xlu0 %v568, 32
  %v570 = vpop.permute.xlu0 %569
  %v571 = vsel %vm130, %v570, 0
  %573 = vmatprep.subr.mxu0 0.0
  %574 = vmatpush1.msra.mxu0 0.0
  %575 = vmatprep.subr.mxu0 0.0
  %576 = vmatpush1.msra.mxu0 0.0
  %577 = vmatprep.subr.mxu0 0.0
  %578 = vmatpush1.msra.mxu0 0.0
  %579 = vmatprep.subr.mxu0 0.0
  %580 = vmatpush1.msra.mxu0 0.0
  %581 = vmatprep.subr.mxu0 0.0
  %582 = vmatpush1.msra.mxu0 0.0
  %583 = vmatprep.subr.mxu0 0.0
  %584 = vmatpush1.msra.mxu0 0.0
  %585 = vmatprep.subr.mxu0 0.0
  %586 = vmatpush1.msra.mxu0 0.0
  %587 = vmatprep.subr.mxu0 0.0
  %588 = vmatpush1.msra.mxu0 0.0
  %589 = vmatprep.subr.mxu0 0.0
  %590 = vmatpush1.msra.mxu0 0.0
  %591 = vmatprep.subr.mxu0 0.0
  %592 = vmatpush1.msra.mxu0 0.0
  %593 = vmatprep.subr.mxu0 0.0
  %594 = vmatpush1.msra.mxu0 0.0
  %595 = vmatprep.subr.mxu0 0.0
  %596 = vmatpush1.msra.mxu0 0.0
  %597 = vmatprep.subr.mxu0 0.0
  %598 = vmatpush1.msra.mxu0 %v129
  %599 = vmatprep.subr.mxu0 0.0
  %600 = vmatpush1.msra.mxu0 %v128
  %601 = vmatprep.subr.mxu0 0.0
  %602 = vmatpush1.msra.mxu0 %v127
  %603 = vmatprep.subr.mxu0 0.0
  %604 = vmatpush1.msra.mxu0 %v126
  %605 = vmatprep.subr.mxu0 0.0
  %606 = vmatpush2.msra.mxu0 0.0
  %607 = vmatprep.subr.mxu0 0.0
  %608 = vmatpush2.msra.mxu0 0.0
  %609 = vmatprep.subr.mxu0 0.0
  %610 = vmatpush2.msra.mxu0 0.0
  %611 = vmatprep.subr.mxu0 0.0
  %612 = vmatpush2.msra.mxu0 0.0
  %613 = vmatprep.subr.mxu0 0.0
  %614 = vmatpush2.msra.mxu0 0.0
  %615 = vmatprep.subr.mxu0 0.0
  %616 = vmatpush2.msra.mxu0 0.0
  %617 = vmatprep.subr.mxu0 0.0
  %618 = vmatpush2.msra.mxu0 0.0
  %619 = vmatprep.subr.mxu0 0.0
  %620 = vmatpush2.msra.mxu0 0.0
  %621 = vmatprep.subr.mxu0 0.0
  %622 = vmatpush2.msra.mxu0 0.0
  %623 = vmatprep.subr.mxu0 0.0
  %624 = vmatpush2.msra.mxu0 0.0
  %625 = vmatprep.subr.mxu0 0.0
  %626 = vmatpush2.msra.mxu0 0.0
  %627 = vmatprep.subr.mxu0 0.0
  %628 = vmatpush2.msra.mxu0 0.0
  %629 = vmatprep.subr.mxu0 0.0
  %630 = vmatpush2.msra.mxu0 0.0
  %631 = vmatprep.subr.mxu0 0.0
  %632 = vmatpush2.msra.mxu0 0.0
  %633 = vmatprep.subr.mxu0 0.0
  %634 = vmatpush2.msra.mxu0 0.0
  %635 = vmatprep.subr.mxu0 0.0
  %636 = vmatpush2.msra.mxu0 0.0
  %637 = vmatprep.mubr.f32.mxu0 0.0
  %638 = vmatmul.mubr.f32.gmra.mxu0 %v571
  %v639 = vpop.f32.mrf.mxu0
  %v640 = vadd.f32 0.0, %v639
  %v641 = vpop.f32.mrf.mxu0
  %642 = vdwg.mxu0
  %v643 = vadd.f32 %v123, %v640
  %v644 = vxor.u32 %v643, 2147483648
  %v645 = vmul.f32 %v644, 1.442695
  %v646 = vpow.pop %v645
  %v647 = vadd.f32 %v646, 1.0
  %v648 = vrcp.pop %v647
  %v649 = vmul.f32 1.0, %v648
  %v650 = vtanh.pop %v643
  %v652 = vrot.slane %v555, 6
  %v654 = vmul.f32 %v649, %v652
  %656 = vrot.lane.b32.xlu0 %v650, 64
  %v657 = vpop.permute.xlu0 %656
  %v659 = vmul.f32 %v649, %v657
  %661 = vrot.lane.b32.xlu0 %v659, 32
  %v662 = vpop.permute.xlu0 %661
  %v664 = vadd.f32 %v654, %v662
  %v665 = vtanh.pop %v664
  %667 = vrot.lane.b32.xlu0 %v665, 64
  %v668 = vpop.permute.xlu0 %667
  %v670 = vmul.f32 %v649, %v668
  %672 = vrot.lane.b32.xlu0 %v670, 32
  %v673 = vpop.permute.xlu0 %672
  %675 = vst.msk [vmem:[#allocation2 + $0x8] sm:$0x3] %vm233, %v673
  %v676 = vsel %vm130, %v673, 0
  %678 = vmatprep.subr.mxu0 0.0
  %679 = vmatpush1.msra.mxu0 0.0
  %680 = vmatprep.subr.mxu0 0.0
  %681 = vmatpush1.msra.mxu0 0.0
  %682 = vmatprep.subr.mxu0 0.0
  %683 = vmatpush1.msra.mxu0 0.0
  %684 = vmatprep.subr.mxu0 0.0
  %685 = vmatpush1.msra.mxu0 0.0
  %686 = vmatprep.subr.mxu0 0.0
  %687 = vmatpush1.msra.mxu0 0.0
  %688 = vmatprep.subr.mxu0 0.0
  %689 = vmatpush1.msra.mxu0 0.0
  %690 = vmatprep.subr.mxu0 0.0
  %691 = vmatpush1.msra.mxu0 0.0
  %692 = vmatprep.subr.mxu0 0.0
  %693 = vmatpush1.msra.mxu0 0.0
  %694 = vmatprep.subr.mxu0 0.0
  %695 = vmatpush1.msra.mxu0 0.0
  %696 = vmatprep.subr.mxu0 0.0
  %697 = vmatpush1.msra.mxu0 0.0
  %698 = vmatprep.subr.mxu0 0.0
  %699 = vmatpush1.msra.mxu0 0.0
  %700 = vmatprep.subr.mxu0 0.0
  %701 = vmatpush1.msra.mxu0 0.0
  %702 = vmatprep.subr.mxu0 0.0
  %703 = vmatpush1.msra.mxu0 %v129
  %704 = vmatprep.subr.mxu0 0.0
  %705 = vmatpush1.msra.mxu0 %v128
  %706 = vmatprep.subr.mxu0 0.0
  %707 = vmatpush1.msra.mxu0 %v127
  %708 = vmatprep.subr.mxu0 0.0
  %709 = vmatpush1.msra.mxu0 %v126
  %710 = vmatprep.subr.mxu0 0.0
  %711 = vmatpush2.msra.mxu0 0.0
  %712 = vmatprep.subr.mxu0 0.0
  %713 = vmatpush2.msra.mxu0 0.0
  %714 = vmatprep.subr.mxu0 0.0
  %715 = vmatpush2.msra.mxu0 0.0
  %716 = vmatprep.subr.mxu0 0.0
  %717 = vmatpush2.msra.mxu0 0.0
  %718 = vmatprep.subr.mxu0 0.0
  %719 = vmatpush2.msra.mxu0 0.0
  %720 = vmatprep.subr.mxu0 0.0
  %721 = vmatpush2.msra.mxu0 0.0
  %722 = vmatprep.subr.mxu0 0.0
  %723 = vmatpush2.msra.mxu0 0.0
  %724 = vmatprep.subr.mxu0 0.0
  %725 = vmatpush2.msra.mxu0 0.0
  %726 = vmatprep.subr.mxu0 0.0
  %727 = vmatpush2.msra.mxu0 0.0
  %728 = vmatprep.subr.mxu0 0.0
  %729 = vmatpush2.msra.mxu0 0.0
  %730 = vmatprep.subr.mxu0 0.0
  %731 = vmatpush2.msra.mxu0 0.0
  %732 = vmatprep.subr.mxu0 0.0
  %733 = vmatpush2.msra.mxu0 0.0
  %734 = vmatprep.subr.mxu0 0.0
  %735 = vmatpush2.msra.mxu0 0.0
  %736 = vmatprep.subr.mxu0 0.0
  %737 = vmatpush2.msra.mxu0 0.0
  %738 = vmatprep.subr.mxu0 0.0
  %739 = vmatpush2.msra.mxu0 0.0
  %740 = vmatprep.subr.mxu0 0.0
  %741 = vmatpush2.msra.mxu0 0.0
  %742 = vmatprep.mubr.f32.mxu0 0.0
  %743 = vmatmul.mubr.f32.gmra.mxu0 %v676
  %v744 = vpop.f32.mrf.mxu0
  %v745 = vadd.f32 0.0, %v744
  %v746 = vpop.f32.mrf.mxu0
  %747 = vdwg.mxu0
  %v749 = vrot.slane %v745, 6
  %v751 = vadd.f32 %v123, %v749
  %v752 = vxor.u32 %v751, 2147483648
  %v753 = vmul.f32 %v752, 1.442695
  %v754 = vpow.pop %v753
  %v755 = vadd.f32 %v754, 1.0
  %v756 = vrcp.pop %v755
  %v757 = vmul.f32 1.0, %v756
  %v758 = vtanh.pop %v751
  %v760 = vrot.slane %v664, 6
  %v762 = vmul.f32 %v757, %v760
  %764 = vrot.lane.b32.xlu0 %v758, 64
  %v765 = vpop.permute.xlu0 %764
  %v767 = vmul.f32 %v757, %v765
  %769 = vrot.lane.b32.xlu0 %v767, 32
  %v770 = vpop.permute.xlu0 %769
  %v772 = vadd.f32 %v762, %v770
  %v773 = vtanh.pop %v772
  %775 = vrot.lane.b32.xlu0 %v773, 64
  %v776 = vpop.permute.xlu0 %775
  %v778 = vmul.f32 %v757, %v776
  %780 = vrot.lane.b32.xlu0 %v778, 32
  %v781 = vpop.permute.xlu0 %780
  %783 = vst.msk [vmem:[#allocation2 + $0x8] sm:$0xc] %vm342, %v781
  %v784 = vrot.slane %v778, 2
  %785 = vrot.lane.b32.xlu0 %v784, 32
  %v786 = vpop.permute.xlu0 %785
  %v787 = vsel %vm130, %v786, 0
  %789 = vmatprep.subr.mxu0 0.0
  %790 = vmatpush1.msra.mxu0 0.0
  %791 = vmatprep.subr.mxu0 0.0
  %792 = vmatpush1.msra.mxu0 0.0
  %793 = vmatprep.subr.mxu0 0.0
  %794 = vmatpush1.msra.mxu0 0.0
  %795 = vmatprep.subr.mxu0 0.0
  %796 = vmatpush1.msra.mxu0 0.0
  %797 = vmatprep.subr.mxu0 0.0
  %798 = vmatpush1.msra.mxu0 0.0
  %799 = vmatprep.subr.mxu0 0.0
  %800 = vmatpush1.msra.mxu0 0.0
  %801 = vmatprep.subr.mxu0 0.0
  %802 = vmatpush1.msra.mxu0 0.0
  %803 = vmatprep.subr.mxu0 0.0
  %804 = vmatpush1.msra.mxu0 0.0
  %805 = vmatprep.subr.mxu0 0.0
  %806 = vmatpush1.msra.mxu0 0.0
  %807 = vmatprep.subr.mxu0 0.0
  %808 = vmatpush1.msra.mxu0 0.0
  %809 = vmatprep.subr.mxu0 0.0
  %810 = vmatpush1.msra.mxu0 0.0
  %811 = vmatprep.subr.mxu0 0.0
  %812 = vmatpush1.msra.mxu0 0.0
  %813 = vmatprep.subr.mxu0 0.0
  %814 = vmatpush1.msra.mxu0 %v129
  %815 = vmatprep.subr.mxu0 0.0
  %816 = vmatpush1.msra.mxu0 %v128
  %817 = vmatprep.subr.mxu0 0.0
  %818 = vmatpush1.msra.mxu0 %v127
  %819 = vmatprep.subr.mxu0 0.0
  %820 = vmatpush1.msra.mxu0 %v126
  %821 = vmatprep.subr.mxu0 0.0
  %822 = vmatpush2.msra.mxu0 0.0
  %823 = vmatprep.subr.mxu0 0.0
  %824 = vmatpush2.msra.mxu0 0.0
  %825 = vmatprep.subr.mxu0 0.0
  %826 = vmatpush2.msra.mxu0 0.0
  %827 = vmatprep.subr.mxu0 0.0
  %828 = vmatpush2.msra.mxu0 0.0
  %829 = vmatprep.subr.mxu0 0.0
  %830 = vmatpush2.msra.mxu0 0.0
  %831 = vmatprep.subr.mxu0 0.0
  %832 = vmatpush2.msra.mxu0 0.0
  %833 = vmatprep.subr.mxu0 0.0
  %834 = vmatpush2.msra.mxu0 0.0
  %835 = vmatprep.subr.mxu0 0.0
  %836 = vmatpush2.msra.mxu0 0.0
  %837 = vmatprep.subr.mxu0 0.0
  %838 = vmatpush2.msra.mxu0 0.0
  %839 = vmatprep.subr.mxu0 0.0
  %840 = vmatpush2.msra.mxu0 0.0
  %841 = vmatprep.subr.mxu0 0.0
  %842 = vmatpush2.msra.mxu0 0.0
  %843 = vmatprep.subr.mxu0 0.0
  %844 = vmatpush2.msra.mxu0 0.0
  %845 = vmatprep.subr.mxu0 0.0
  %846 = vmatpush2.msra.mxu0 0.0
  %847 = vmatprep.subr.mxu0 0.0
  %848 = vmatpush2.msra.mxu0 0.0
  %849 = vmatprep.subr.mxu0 0.0
  %850 = vmatpush2.msra.mxu0 0.0
  %851 = vmatprep.subr.mxu0 0.0
  %852 = vmatpush2.msra.mxu0 0.0
  %853 = vmatprep.mubr.f32.mxu0 0.0
  %854 = vmatmul.mubr.f32.gmra.mxu0 %v787
  %v855 = vpop.f32.mrf.mxu0
  %v856 = vadd.f32 0.0, %v855
  %v857 = vpop.f32.mrf.mxu0
  %858 = vdwg.mxu0
  %v860 = vrot.slane %v856, 4
  %v862 = vadd.f32 %v123, %v860
  %v863 = vxor.u32 %v862, 2147483648
  %v864 = vmul.f32 %v863, 1.442695
  %v865 = vpow.pop %v864
  %v866 = vadd.f32 %v865, 1.0
  %v867 = vrcp.pop %v866
  %v868 = vmul.f32 1.0, %v867
  %v869 = vtanh.pop %v862
  %v871 = vrot.slane %v772, 6
  %v873 = vmul.f32 %v868, %v871
  %875 = vrot.lane.b32.xlu0 %v869, 64
  %v876 = vpop.permute.xlu0 %875
  %v878 = vmul.f32 %v868, %v876
  %880 = vrot.lane.b32.xlu0 %v878, 32
  %v881 = vpop.permute.xlu0 %880
  %v883 = vadd.f32 %v873, %v881
  %v884 = vtanh.pop %v883
  %886 = vrot.lane.b32.xlu0 %v884, 64
  %v887 = vpop.permute.xlu0 %886
  %v889 = vmul.f32 %v868, %v887
  %891 = vrot.lane.b32.xlu0 %v889, 32
  %v892 = vpop.permute.xlu0 %891
  %894 = vst.msk [vmem:[#allocation2 + $0x8] sm:$0x30] %vm454, %v892
  %v895 = vrot.slane %v889, 4
  %896 = vrot.lane.b32.xlu0 %v895, 32
  %v897 = vpop.permute.xlu0 %896
  %v898 = vsel %vm130, %v897, 0
  %900 = vmatprep.subr.mxu0 0.0
  %901 = vmatpush1.msra.mxu0 0.0
  %902 = vmatprep.subr.mxu0 0.0
  %903 = vmatpush1.msra.mxu0 0.0
  %904 = vmatprep.subr.mxu0 0.0
  %905 = vmatpush1.msra.mxu0 0.0
  %906 = vmatprep.subr.mxu0 0.0
  %907 = vmatpush1.msra.mxu0 0.0
  %908 = vmatprep.subr.mxu0 0.0
  %909 = vmatpush1.msra.mxu0 0.0
  %910 = vmatprep.subr.mxu0 0.0
  %911 = vmatpush1.msra.mxu0 0.0
  %912 = vmatprep.subr.mxu0 0.0
  %913 = vmatpush1.msra.mxu0 0.0
  %914 = vmatprep.subr.mxu0 0.0
  %915 = vmatpush1.msra.mxu0 0.0
  %916 = vmatprep.subr.mxu0 0.0
  %917 = vmatpush1.msra.mxu0 0.0
  %918 = vmatprep.subr.mxu0 0.0
  %919 = vmatpush1.msra.mxu0 0.0
  %920 = vmatprep.subr.mxu0 0.0
  %921 = vmatpush1.msra.mxu0 0.0
  %922 = vmatprep.subr.mxu0 0.0
  %923 = vmatpush1.msra.mxu0 0.0
  %924 = vmatprep.subr.mxu0 0.0
  %925 = vmatpush1.msra.mxu0 %v129
  %926 = vmatprep.subr.mxu0 0.0
  %927 = vmatpush1.msra.mxu0 %v128
  %928 = vmatprep.subr.mxu0 0.0
  %929 = vmatpush1.msra.mxu0 %v127
  %930 = vmatprep.subr.mxu0 0.0
  %931 = vmatpush1.msra.mxu0 %v126
  %932 = vmatprep.subr.mxu0 0.0
  %933 = vmatpush2.msra.mxu0 0.0
  %934 = vmatprep.subr.mxu0 0.0
  %935 = vmatpush2.msra.mxu0 0.0
  %936 = vmatprep.subr.mxu0 0.0
  %937 = vmatpush2.msra.mxu0 0.0
  %938 = vmatprep.subr.mxu0 0.0
  %939 = vmatpush2.msra.mxu0 0.0
  %940 = vmatprep.subr.mxu0 0.0
  %941 = vmatpush2.msra.mxu0 0.0
  %942 = vmatprep.subr.mxu0 0.0
  %943 = vmatpush2.msra.mxu0 0.0
  %944 = vmatprep.subr.mxu0 0.0
  %945 = vmatpush2.msra.mxu0 0.0
  %946 = vmatprep.subr.mxu0 0.0
  %947 = vmatpush2.msra.mxu0 0.0
  %948 = vmatprep.subr.mxu0 0.0
  %949 = vmatpush2.msra.mxu0 0.0
  %950 = vmatprep.subr.mxu0 0.0
  %951 = vmatpush2.msra.mxu0 0.0
  %952 = vmatprep.subr.mxu0 0.0
  %953 = vmatpush2.msra.mxu0 0.0
  %954 = vmatprep.subr.mxu0 0.0
  %955 = vmatpush2.msra.mxu0 0.0
  %956 = vmatprep.subr.mxu0 0.0
  %957 = vmatpush2.msra.mxu0 0.0
  %958 = vmatprep.subr.mxu0 0.0
  %959 = vmatpush2.msra.mxu0 0.0
  %960 = vmatprep.subr.mxu0 0.0
  %961 = vmatpush2.msra.mxu0 0.0
  %962 = vmatprep.subr.mxu0 0.0
  %963 = vmatpush2.msra.mxu0 0.0
  %964 = vmatprep.mubr.f32.mxu0 0.0
  %965 = vmatmul.mubr.f32.gmra.mxu0 %v898
  %v966 = vpop.f32.mrf.mxu0
  %v967 = vadd.f32 0.0, %v966
  %v968 = vpop.f32.mrf.mxu0
  %969 = vdwg.mxu0
  %v971 = vrot.slane %v967, 2
  %v973 = vadd.f32 %v123, %v971
  %v974 = vxor.u32 %v973, 2147483648
  %v975 = vmul.f32 %v974, 1.442695
  %v976 = vpow.pop %v975
  %v977 = vadd.f32 %v976, 1.0
  %v978 = vrcp.pop %v977
  %v979 = vmul.f32 1.0, %v978
  %v980 = vtanh.pop %v973
  %v982 = vrot.slane %v883, 6
  %v984 = vmul.f32 %v979, %v982
  %986 = vrot.lane.b32.xlu0 %v980, 64
  %v987 = vpop.permute.xlu0 %986
  %v989 = vmul.f32 %v979, %v987
  %991 = vrot.lane.b32.xlu0 %v989, 32
  %v992 = vpop.permute.xlu0 %991
  %v994 = vadd.f32 %v984, %v992
  %v995 = vtanh.pop %v994
  %997 = vrot.lane.b32.xlu0 %v995, 64
  %v998 = vpop.permute.xlu0 %997
  %v1000 = vmul.f32 %v979, %v998
  %1002 = vrot.lane.b32.xlu0 %v1000, 32
  %v1003 = vpop.permute.xlu0 %1002
  %1005 = vst.msk [vmem:[#allocation2 + $0x8] sm:$0xc0] %vm566, %v1003
  %v1006 = vld [vmem:[#allocation2] sm:$0xff]
  %v1007 = vld [vmem:[#allocation2 + $0x8] sm:$0xff]
  %v1008 = vmax.f32 %v1006, 0.0
  %v1009 = vmax.f32 %v1007, 0.0
  %v1010 = vld [vmem:[%s4] sm:$0xff]
  %v1011 = vld [vmem:[%s4 + $0x8] sm:$0xff]
  %v1012 = vld [vmem:[%s4 + $0x10] sm:$0xff]
  %v1013 = vld [vmem:[%s4 + $0x18] sm:$0xff]
  %v1014 = vld [vmem:[%s5] sm:$0x1]
  %v1016 = vlaneseq
  %v1017 = vshrl.u32 %v1016, 7
  %v1018 = vsub.s32 0, %v1017
  %v1019 = vrot.slane %v1014, %v1018
  %v1022 = vsel %vm130, %v1008, 0
  %v1025 = vsel %vm130, %v1009, 0
  %1027 = vmatprep.subr.mxu0 0.0
  %1028 = vmatpush1.msra.mxu0 0.0
  %1029 = vmatprep.subr.mxu0 0.0
  %1030 = vmatpush1.msra.mxu0 0.0
  %1031 = vmatprep.subr.mxu0 0.0
  %1032 = vmatpush1.msra.mxu0 0.0
  %1033 = vmatprep.subr.mxu0 0.0
  %1034 = vmatpush1.msra.mxu0 0.0
  %1035 = vmatprep.subr.mxu0 0.0
  %1036 = vmatpush1.msra.mxu0 0.0
  %1037 = vmatprep.subr.mxu0 0.0
  %1038 = vmatpush1.msra.mxu0 0.0
  %1039 = vmatprep.subr.mxu0 0.0
  %1040 = vmatpush1.msra.mxu0 0.0
  %1041 = vmatprep.subr.mxu0 0.0
  %1042 = vmatpush1.msra.mxu0 0.0
  %1043 = vmatprep.subr.mxu0 0.0
  %1044 = vmatpush1.msra.mxu0 0.0
  %1045 = vmatprep.subr.mxu0 0.0
  %1046 = vmatpush1.msra.mxu0 0.0
  %1047 = vmatprep.subr.mxu0 0.0
  %1048 = vmatpush1.msra.mxu0 0.0
  %1049 = vmatprep.subr.mxu0 0.0
  %1050 = vmatpush1.msra.mxu0 0.0
  %1051 = vmatprep.subr.mxu0 0.0
  %1052 = vmatpush1.msra.mxu0 %v1013
  %1053 = vmatprep.subr.mxu0 0.0
  %1054 = vmatpush1.msra.mxu0 %v1012
  %1055 = vmatprep.subr.mxu0 0.0
  %1056 = vmatpush1.msra.mxu0 %v1011
  %1057 = vmatprep.subr.mxu0 0.0
  %1058 = vmatpush1.msra.mxu0 %v1010
  %1059 = vmatprep.subr.mxu0 0.0
  %1060 = vmatpush2.msra.mxu0 0.0
  %1061 = vmatprep.subr.mxu0 0.0
  %1062 = vmatpush2.msra.mxu0 0.0
  %1063 = vmatprep.subr.mxu0 0.0
  %1064 = vmatpush2.msra.mxu0 0.0
  %1065 = vmatprep.subr.mxu0 0.0
  %1066 = vmatpush2.msra.mxu0 0.0
  %1067 = vmatprep.subr.mxu0 0.0
  %1068 = vmatpush2.msra.mxu0 0.0
  %1069 = vmatprep.subr.mxu0 0.0
  %1070 = vmatpush2.msra.mxu0 0.0
  %1071 = vmatprep.subr.mxu0 0.0
  %1072 = vmatpush2.msra.mxu0 0.0
  %1073 = vmatprep.subr.mxu0 0.0
  %1074 = vmatpush2.msra.mxu0 0.0
  %1075 = vmatprep.subr.mxu0 0.0
  %1076 = vmatpush2.msra.mxu0 0.0
  %1077 = vmatprep.subr.mxu0 0.0
  %1078 = vmatpush2.msra.mxu0 0.0
  %1079 = vmatprep.subr.mxu0 0.0
  %1080 = vmatpush2.msra.mxu0 0.0
  %1081 = vmatprep.subr.mxu0 0.0
  %1082 = vmatpush2.msra.mxu0 0.0
  %1083 = vmatprep.subr.mxu0 0.0
  %1084 = vmatpush2.msra.mxu0 0.0
  %1085 = vmatprep.subr.mxu0 0.0
  %1086 = vmatpush2.msra.mxu0 0.0
  %1087 = vmatprep.subr.mxu0 0.0
  %1088 = vmatpush2.msra.mxu0 0.0
  %1089 = vmatprep.subr.mxu0 0.0
  %1090 = vmatpush2.msra.mxu0 0.0
  %1091 = vmatprep.mubr.f32.mxu0 0.0
  %1092 = vmatmul.mubr.f32.gmra.mxu0 %v1022
  %v1093 = vpop.f32.mrf.mxu0
  %v1094 = vadd.f32 %v1019, %v1093
  %v1095 = vpop.f32.mrf.mxu0
  %1096 = vmatprep.mubr.f32.mxu0 0.0
  %1097 = vmatmul.mubr.f32.gmra.mxu0 %v1025
  %v1098 = vpop.f32.mrf.mxu0
  %v1099 = vadd.f32 %v1019, %v1098
  %v1100 = vpop.f32.mrf.mxu0
  %1101 = vdwg.mxu0
  %v1102 = vmax.f32 %v1094, 0.0
  %v1103 = vmax.f32 %v1099, 0.0
  %v1104 = vld [vmem:[%s6] sm:$0xff]
  %v1105 = vld [vmem:[%s6 + $0x8] sm:$0xff]
  %v1106 = vld [vmem:[%s7] sm:$0x1]
  %v1108 = vlaneseq
  %v1109 = vshrl.u32 %v1108, 7
  %v1110 = vsub.s32 0, %v1109
  %v1111 = vrot.slane %v1106, %v1110
  %vm1113 = vcmask 130048
  %v1115 = vsel %vm1113, %v1102, 0
  %v1118 = vsel %vm1113, %v1103, 0
  %1120 = vmatprep.subr.mxu0 0.0
  %1121 = vmatpush1.msra.mxu0 0.0
  %1122 = vmatprep.subr.mxu0 0.0
  %1123 = vmatpush1.msra.mxu0 0.0
  %1124 = vmatprep.subr.mxu0 0.0
  %1125 = vmatpush1.msra.mxu0 0.0
  %1126 = vmatprep.subr.mxu0 0.0
  %1127 = vmatpush1.msra.mxu0 0.0
  %1128 = vmatprep.subr.mxu0 0.0
  %1129 = vmatpush1.msra.mxu0 0.0
  %1130 = vmatprep.subr.mxu0 0.0
  %1131 = vmatpush1.msra.mxu0 0.0
  %1132 = vmatprep.subr.mxu0 0.0
  %1133 = vmatpush1.msra.mxu0 0.0
  %1134 = vmatprep.subr.mxu0 0.0
  %1135 = vmatpush1.msra.mxu0 0.0
  %1136 = vmatprep.subr.mxu0 0.0
  %1137 = vmatpush1.msra.mxu0 0.0
  %1138 = vmatprep.subr.mxu0 0.0
  %1139 = vmatpush1.msra.mxu0 0.0
  %1140 = vmatprep.subr.mxu0 0.0
  %1141 = vmatpush1.msra.mxu0 0.0
  %1142 = vmatprep.subr.mxu0 0.0
  %1143 = vmatpush1.msra.mxu0 0.0
  %1144 = vmatprep.subr.mxu0 0.0
  %1145 = vmatpush1.msra.mxu0 0.0
  %1146 = vmatprep.subr.mxu0 0.0
  %1147 = vmatpush1.msra.mxu0 0.0
  %1148 = vmatprep.subr.mxu0 0.0
  %1149 = vmatpush1.msra.mxu0 %v1105
  %1150 = vmatprep.subr.mxu0 0.0
  %1151 = vmatpush1.msra.mxu0 %v1104
  %1152 = vmatprep.subr.mxu0 0.0
  %1153 = vmatpush2.msra.mxu0 0.0
  %1154 = vmatprep.subr.mxu0 0.0
  %1155 = vmatpush2.msra.mxu0 0.0
  %1156 = vmatprep.subr.mxu0 0.0
  %1157 = vmatpush2.msra.mxu0 0.0
  %1158 = vmatprep.subr.mxu0 0.0
  %1159 = vmatpush2.msra.mxu0 0.0
  %1160 = vmatprep.subr.mxu0 0.0
  %1161 = vmatpush2.msra.mxu0 0.0
  %1162 = vmatprep.subr.mxu0 0.0
  %1163 = vmatpush2.msra.mxu0 0.0
  %1164 = vmatprep.subr.mxu0 0.0
  %1165 = vmatpush2.msra.mxu0 0.0
  %1166 = vmatprep.subr.mxu0 0.0
  %1167 = vmatpush2.msra.mxu0 0.0
  %1168 = vmatprep.subr.mxu0 0.0
  %1169 = vmatpush2.msra.mxu0 0.0
  %1170 = vmatprep.subr.mxu0 0.0
  %1171 = vmatpush2.msra.mxu0 0.0
  %1172 = vmatprep.subr.mxu0 0.0
  %1173 = vmatpush2.msra.mxu0 0.0
  %1174 = vmatprep.subr.mxu0 0.0
  %1175 = vmatpush2.msra.mxu0 0.0
  %1176 = vmatprep.subr.mxu0 0.0
  %1177 = vmatpush2.msra.mxu0 0.0
  %1178 = vmatprep.subr.mxu0 0.0
  %1179 = vmatpush2.msra.mxu0 0.0
  %1180 = vmatprep.subr.mxu0 0.0
  %1181 = vmatpush2.msra.mxu0 0.0
  %1182 = vmatprep.subr.mxu0 0.0
  %1183 = vmatpush2.msra.mxu0 0.0
  %1184 = vmatprep.mubr.f32.mxu0 0.0
  %1185 = vmatmul.mubr.f32.gmra.mxu0 %v1115
  %v1186 = vpop.f32.mrf.mxu0
  %v1187 = vadd.f32 %v1111, %v1186
  %v1188 = vpop.f32.mrf.mxu0
  %1189 = vmatprep.mubr.f32.mxu0 0.0
  %1190 = vmatmul.mubr.f32.gmra.mxu0 %v1118
  %v1191 = vpop.f32.mrf.mxu0
  %v1192 = vadd.f32 %v1111, %v1191
  %v1193 = vpop.f32.mrf.mxu0
  %1194 = vdwg.mxu0
  %vm1195 = vcmask 15360
  %1196 = vst.msk [vmem:[%s8] sm:$0xff] %vm1195, %v1187
  %1197 = vst.msk [vmem:[%s8 + $0x8] sm:$0xff] %vm1195, %v1192
  // Predicated region
  $region34: #{tpu_custom_call.1} parent=0 // pred_check
    _
  $region35: #{tpu_custom_call.1} parent=0 // pred_check_branch
    %1199 = sbr.rel (0) target = $region37
  $region36: #{tpu_custom_call.1} parent=0 // pred_region
    _
  $region37: #{tpu_custom_call.1} parent=0 // pred_fallthru
    _
  // Predicated region
  $region38: #{tpu_custom_call.1} parent=0 // pred_check
    _
  $region39: #{tpu_custom_call.1} parent=0 // pred_check_branch
    %1201 = sbr.rel (0) target = $region41
  $region40: #{tpu_custom_call.1} parent=0 // pred_region
    _
  $region41: #{tpu_custom_call.1} parent=0 // pred_fallthru
    _

</llo_original>
